<compile_context>
chip_gen: v6e
topology: v6e:2x2x1
jax: 0.10.0
libtpu: 0.0.40
codegen_flags: <defaults>
</compile_context>

<pallas_src>
import jax
import jax.numpy as jnp
from jax import lax
from jax.experimental import pallas as pl
from jax.experimental.pallas import tpu as pltpu

NUM_ID_WEIGHTS = 7
NEG_SLOPE = 0.2
NEG_INF = -1e30


def _gat_id_kernel(x_ref, label_ref, group_ref, wid_ref, sel_ref,
                   attd_ref, atts_ref, adj_ref, o_ref):
    sbs, gn, _ = adj_ref.shape

    # Shared (tiny) operands, loaded once per grid step.
    w_packed = wid_ref[...]                                # (C, 7C)  bf16
    sel = sel_ref[...]                                     # (7C, C)  bf16
    att_dst = attd_ref[...].astype(jnp.bfloat16)           # (C, 1)
    att_src = atts_ref[...].astype(jnp.bfloat16)           # (1, C)
    group_row = group_ref[...]                             # (1, 7C)  int32

    def body(s, carry):
        r0 = pl.multiple_of(s * gn, gn)
        x_bf = x_ref[pl.ds(r0, gn), :]                     # (GN, C)  bf16
        label = label_ref[pl.ds(r0, gn), :]                # (GN, 1)  int32

        # --- identity-aware transform, fully on the MXU ---
        # y[:, i*C:(i+1)*C] = x @ W_id[i]; keep only the node's label group,
        # then the stacked-identity selector sums the 7 groups back to C cols.
        y = jnp.dot(x_bf, w_packed, preferred_element_type=jnp.float32)   # (GN, 7C)
        ym = jnp.where(group_row == label, y, 0.0)
        ox = x_bf.astype(jnp.float32) + jnp.dot(
            ym.astype(jnp.bfloat16), sel, preferred_element_type=jnp.float32)  # (GN, C)
        ox_bf = ox.astype(jnp.bfloat16)

        # --- attention logits: score[i, j] = <ox_i, att_dst> + <ox_j, att_src> ---
        a_dst = jnp.dot(ox_bf, att_dst, preferred_element_type=jnp.float32)      # (GN, 1)
        b_src = lax.dot_general(att_src, ox_bf, (((1,), (1,)), ((), ())),
                                preferred_element_type=jnp.float32)              # (1, GN)
        score = a_dst + b_src                                # broadcast add (GN, GN)
        score = jnp.maximum(score, NEG_SLOPE * score)        # leaky_relu(0.2)

        # --- masked softmax over incoming edges (block-diagonal adj per graph) ---
        masked = jnp.where(adj_ref[s] != 0, score, NEG_INF)  # int8 compare, no f32 cast
        row_max = jnp.max(masked, axis=-1, keepdims=True)
        p = jnp.exp(masked - row_max)             # masked entries underflow to exactly 0
        denom = jnp.sum(p, axis=-1, keepdims=True)   # >= 1 live term: self-loop always set
        alpha = p * pl.reciprocal(denom, approx=True)

        # --- aggregate (aggr='add'): out[i] = sum_j alpha[i, j] * ox[j] ---
        out = jnp.dot(alpha.astype(jnp.bfloat16), ox_bf,
                      preferred_element_type=jnp.float32)
        o_ref[pl.ds(r0, gn), :] = out.astype(o_ref.dtype)
        return carry

    lax.fori_loop(0, sbs, body, 0, unroll=True)


def _build_adj_single(edge_index, num_nodes):
    """remove_self_loops + add_self_loops, densified to an (N, N) 0/1 int8 mask.

    adj[dst, src] == 1 iff edge src->dst exists (or dst == src).
    """
    # TODO(synk): duplicate edges in edge_index are deduplicated by the dense
    # mask (PyG's edge-list softmax would weight them multiply).
    src, dst = edge_index[0], edge_index[1]
    adj = jnp.zeros((num_nodes, num_nodes), jnp.int32)
    adj = adj.at[dst, src].max((src != dst).astype(jnp.int32))
    adj = jnp.maximum(adj, jnp.eye(num_nodes, dtype=jnp.int32))
    return adj.astype(jnp.int8)


def gat_id_conv(x, node_label, edge_index, weight_id, att, *,
                graphs_per_block=8, super_blocks_per_step=2):
    """Forward of GATIDConv (heads=1, concat=True, bias=False, dropout=0).

    x:          (B, N, C) node features for B independent small graphs
    node_label: (B, N)    int labels, 0 = plain, 1..7 = identity group
    edge_index: (B, 2, E) int edge list per graph (row 0 = src, row 1 = dst)
    weight_id:  (7, C, C) per-group identity weights
    att:        (1, 1, 2*C) attention vector (heads = 1)
    """
    b, n, c = x.shape
    g = graphs_per_block
    sbs = super_blocks_per_step
    assert b % g == 0, "batch must be divisible by graphs_per_block"
    nsb = b // g                      # total GN=g*n node super-blocks
    assert nsb % sbs == 0, "super-blocks must divide evenly into grid steps"
    grid = nsb // sbs                 # keep even (and >=2 per core) for v7x megacore
    gn = g * n

    # glue: dense per-graph adjacency, packed block-diagonally per super-block
    adj_g = jax.vmap(lambda ei: _build_adj_single(ei, n))(edge_index)   # (B,N,N) i8
    adj_g = adj_g.reshape(nsb, g, n, n)
    adj_sb = jnp.zeros((nsb, gn, gn), jnp.int8)
    for i in range(g):
        blk = slice(i * n, (i + 1) * n)
        adj_sb = adj_sb.at[:, blk, blk].set(adj_g[:, i])

    x_flat = x.reshape(b * n, c).astype(jnp.bfloat16)            # bf16 in HBM
    label_flat = node_label.reshape(b * n, 1).astype(jnp.int32)

    # pack the 7 ID weight matrices along the output axis -> one wide matmul;
    # stacked-identity selector sums the 7 masked groups back to C columns;
    # the precomputed group-id row replaces the in-kernel iota // C mask.
    w_packed = jnp.transpose(weight_id, (1, 0, 2)).reshape(
        c, NUM_ID_WEIGHTS * c).astype(jnp.bfloat16)
    sel = jnp.tile(jnp.eye(c, dtype=jnp.bfloat16), (NUM_ID_WEIGHTS, 1))   # (7C, C)
    group_row = (jnp.arange(NUM_ID_WEIGHTS * c, dtype=jnp.int32) // c
                 + 1).reshape(1, NUM_ID_WEIGHTS * c)

    att_flat = att.reshape(-1).astype(jnp.float32)
    att_dst = att_flat[:c].reshape(c, 1)                          # <x_i, att[:C]>
    att_src = att_flat[c:].reshape(1, c)                          # <x_j, att[C:]>

    out = pl.pallas_call(
        _gat_id_kernel,
        out_shape=jax.ShapeDtypeStruct((b * n, c), x.dtype),
        grid=(grid,),
        in_specs=[
            pl.BlockSpec((sbs * gn, c), lambda i: (i, 0)),                 # x (bf16)
            pl.BlockSpec((sbs * gn, 1), lambda i: (i, 0)),                 # labels
            pl.BlockSpec((1, NUM_ID_WEIGHTS * c), lambda i: (0, 0)),       # group ids (shared)
            pl.BlockSpec((c, NUM_ID_WEIGHTS * c), lambda i: (0, 0)),       # W_packed (shared)
            pl.BlockSpec((NUM_ID_WEIGHTS * c, c), lambda i: (0, 0)),       # selector (shared)
            pl.BlockSpec((c, 1), lambda i: (0, 0)),                        # att_dst (shared)
            pl.BlockSpec((1, c), lambda i: (0, 0)),                        # att_src (shared)
            pl.BlockSpec((sbs, gn, gn), lambda i: (i, 0, 0)),              # block-diag adj (int8)
        ],
        out_specs=pl.BlockSpec((sbs * gn, c), lambda i: (i, 0)),
        compiler_params=pltpu.CompilerParams(dimension_semantics=("parallel",)),
    )(x_flat, label_flat, group_row, w_packed, sel, att_dst, att_src, adj_sb)
    return out.reshape(b, n, c)


def _reference_single(x, node_label, adj, weight_id, att):
    """Pure-JAX f32 reference mirroring the PyTorch forward (one graph)."""
    c = x.shape[-1]
    ox = x
    for i in range(NUM_ID_WEIGHTS):
        m = (node_label == i + 1).astype(x.dtype)[:, None]
        ox = ox + m * (x @ weight_id[i])
    att_flat = att.reshape(-1)
    a = ox @ att_flat[:c]
    b = ox @ att_flat[c:]
    score = a[:, None] + b[None, :]
    score = jnp.where(score > 0, score, NEG_SLOPE * score)
    masked = jnp.where(adj > 0, score, NEG_INF)
    p = jnp.exp(masked - jnp.max(masked, axis=-1, keepdims=True)) * (adj > 0)
    alpha = p / jnp.sum(p, axis=-1, keepdims=True)
    return alpha @ ox


if __name__ == "__main__":
    key = jax.random.PRNGKey(0)
    # dim_in == dim_out (required by the ID index_add_ path); GN = G*N = 128.
    B, N, C, E = 32, 16, 32, 48
    G, SBS = 8, 2              # nsb = 4 super-blocks, grid = (2,) (even, for v7x)
    k1, k2, k3, k4, k5 = jax.random.split(key, 5)

    x = jax.random.normal(k1, (B, N, C), jnp.float32)
    node_label = jax.random.randint(k2, (B, N), 0, 8, jnp.int32)   # 0 plain, 1..7 id group
    edge_index = jax.random.randint(k3, (B, 2, E), 0, N, jnp.int32)

    # Deterministic glorot-style synthetic parameter init (no checkpoint load).
    def glorot(k, shape, fan_in, fan_out):
        bound = (6.0 / (fan_in + fan_out)) ** 0.5
        return jax.random.uniform(k, shape, jnp.float32, -bound, bound)

    weight_id = glorot(k4, (NUM_ID_WEIGHTS, C, C), C, C)   # 7 x (in_ch, out_ch)
    att = glorot(k5, (1, 1, 2 * C), 1, 2 * C)              # (1, heads, 2*out_ch)
    # self.weight / bias exist in the module but are unused on this forward path
    # (dense-tensor input, bias=False, dropout=0).

    out = jax.block_until_ready(
        gat_id_conv(x, node_label, edge_index, weight_id, att,
                    graphs_per_block=G, super_blocks_per_step=SBS))

    adj_ref = jax.vmap(lambda ei: _build_adj_single(ei, N))(edge_index)
    ref = jax.vmap(_reference_single, in_axes=(0, 0, 0, None, None))(
        x, node_label, adj_ref, weight_id, att)

    assert out.shape == (B, N, C) and out.dtype == jnp.float32
    # Tolerance vs the all-f32 reference: x/att/alpha and the ID matmuls use bf16
    # MXU operands (f32 accumulation) and the softmax denominator uses the
    # approximate EUP reciprocal, so rows of alpha sum to 1 only to ~1e-3.
    assert jnp.allclose(out, ref, atol=1e-1, rtol=1e-1), "kernel does not match reference"
    print("KERNEL_OK")
</pallas_src>

<mosaic_0001>
module attributes {stable_mosaic.version = 11 : i64} {
  func.func @_gat_id_kernel(%arg0: i32, %arg1: memref<256x32xbf16, #tpu.memory_space<vmem>>, %arg2: memref<256x1xi32, #tpu.memory_space<vmem>>, %arg3: memref<1x224xi32, #tpu.memory_space<vmem>>, %arg4: memref<32x224xbf16, #tpu.memory_space<vmem>>, %arg5: memref<224x32xbf16, #tpu.memory_space<vmem>>, %arg6: memref<32x1xf32, #tpu.memory_space<vmem>>, %arg7: memref<1x32xf32, #tpu.memory_space<vmem>>, %arg8: memref<2x128x128xi8, #tpu.memory_space<vmem>>, %arg9: memref<256x32xf32, #tpu.memory_space<vmem>>) attributes {dimension_semantics = [#tpu.dimension_semantics<parallel>], iteration_bounds = array<i64: 2>, scalar_prefetch = 0 : i64, scratch_operands = 0 : i64, tpu.core_type = #tpu.core_type<tc>, window_params = [{transform_indices = @transform_0, window_bounds = array<i64: 256, 32>}, {transform_indices = @transform_1, window_bounds = array<i64: 256, 1>}, {pipeline_mode = #tpu.pipeline_mode<synchronous>, transform_indices = @transform_2, window_bounds = array<i64: 1, 224>}, {pipeline_mode = #tpu.pipeline_mode<synchronous>, transform_indices = @transform_3, window_bounds = array<i64: 32, 224>}, {pipeline_mode = #tpu.pipeline_mode<synchronous>, transform_indices = @transform_4, window_bounds = array<i64: 224, 32>}, {pipeline_mode = #tpu.pipeline_mode<synchronous>, transform_indices = @transform_5, window_bounds = array<i64: 32, 1>}, {pipeline_mode = #tpu.pipeline_mode<synchronous>, transform_indices = @transform_6, window_bounds = array<i64: 1, 32>}, {transform_indices = @transform_7, window_bounds = array<i64: 2, 128, 128>}, {transform_indices = @transform_8, window_bounds = array<i64: 256, 32>}]} {
    %c0 = arith.constant 0 : index
    %c0_0 = arith.constant 0 : index
    %0 = vector.load %arg4[%c0, %c0_0] : memref<32x224xbf16, #tpu.memory_space<vmem>>, vector<32x224xbf16>
    %c0_1 = arith.constant 0 : index
    %c0_2 = arith.constant 0 : index
    %1 = vector.load %arg5[%c0_1, %c0_2] : memref<224x32xbf16, #tpu.memory_space<vmem>>, vector<224x32xbf16>
    %c0_3 = arith.constant 0 : index
    %c0_4 = arith.constant 0 : index
    %2 = vector.load %arg6[%c0_3, %c0_4] : memref<32x1xf32, #tpu.memory_space<vmem>>, vector<32x1xf32>
    %3 = arith.truncf %2 : vector<32x1xf32> to vector<32x1xbf16>
    %c0_5 = arith.constant 0 : index
    %c0_6 = arith.constant 0 : index
    %4 = vector.load %arg7[%c0_5, %c0_6] : memref<1x32xf32, #tpu.memory_space<vmem>>, vector<1x32xf32>
    %5 = arith.truncf %4 : vector<1x32xf32> to vector<1x32xbf16>
    %c0_7 = arith.constant 0 : index
    %c0_8 = arith.constant 0 : index
    %6 = vector.load %arg3[%c0_7, %c0_8] : memref<1x224xi32, #tpu.memory_space<vmem>>, vector<1x224xi32>
    %c0_i32 = arith.constant 0 : i32
    %c128_i32 = arith.constant 128 : i32
    %7 = arith.muli %c0_i32, %c128_i32 : i32
    %8 = tpu.assume_multiple %7, 128 : i32
    %9 = arith.index_cast %8 : i32 to index
    %c0_9 = arith.constant 0 : index
    %10 = vector.load %arg1[%9, %c0_9] : memref<256x32xbf16, #tpu.memory_space<vmem>>, vector<128x32xbf16>
    %11 = arith.index_cast %8 : i32 to index
    %c0_10 = arith.constant 0 : index
    %12 = vector.load %arg2[%11, %c0_10] : memref<256x1xi32, #tpu.memory_space<vmem>>, vector<128x1xi32>
    %cst = arith.constant dense<0.000000e+00> : vector<128x224xf32>
    %13 = tpu.matmul %10, %0, %cst {dimension_numbers = #tpu.dot_dimension_numbers<[1], [0], [0], [1], [0, 0, 1, 1], [], []>} : vector<128x32xbf16>, vector<32x224xbf16>, vector<128x224xf32> -> vector<128x224xf32>
    %14 = vector.broadcast %6 : vector<1x224xi32> to vector<128x224xi32>
    %15 = vector.broadcast %12 : vector<128x1xi32> to vector<128x224xi32>
    %16 = arith.cmpi eq, %14, %15 : vector<128x224xi32>
    %cst_11 = arith.constant 0.000000e+00 : f32
    %17 = vector.broadcast %cst_11 : f32 to vector<128x224xf32>
    %18 = arith.select %16, %13, %17 : vector<128x224xi1>, vector<128x224xf32>
    %19 = arith.extf %10 : vector<128x32xbf16> to vector<128x32xf32>
    %20 = arith.truncf %18 : vector<128x224xf32> to vector<128x224xbf16>
    %cst_12 = arith.constant dense<0.000000e+00> : vector<128x32xf32>
    %21 = tpu.matmul %20, %1, %cst_12 {dimension_numbers = #tpu.dot_dimension_numbers<[1], [0], [0], [1], [0, 0, 1, 1], [], []>} : vector<128x224xbf16>, vector<224x32xbf16>, vector<128x32xf32> -> vector<128x32xf32>
    %22 = arith.addf %19, %21 : vector<128x32xf32>
    %23 = arith.truncf %22 : vector<128x32xf32> to vector<128x32xbf16>
    %cst_13 = arith.constant dense<0.000000e+00> : vector<128x1xf32>
    %24 = tpu.matmul %23, %3, %cst_13 {dimension_numbers = #tpu.dot_dimension_numbers<[1], [0], [0], [1], [0, 0, 1, 1], [], []>} : vector<128x32xbf16>, vector<32x1xbf16>, vector<128x1xf32> -> vector<128x1xf32>
    %cst_14 = arith.constant dense<0.000000e+00> : vector<1x128xf32>
    %25 = tpu.matmul %5, %23, %cst_14 {dimension_numbers = #tpu.dot_dimension_numbers<[1], [1], [0], [0], [0, 0, 1, 0], [], []>} : vector<1x32xbf16>, vector<128x32xbf16>, vector<1x128xf32> -> vector<1x128xf32>
    %26 = vector.broadcast %24 : vector<128x1xf32> to vector<128x128xf32>
    %27 = vector.broadcast %25 : vector<1x128xf32> to vector<128x128xf32>
    %28 = arith.addf %26, %27 : vector<128x128xf32>
    %cst_15 = arith.constant 2.000000e-01 : f32
    %29 = vector.broadcast %cst_15 : f32 to vector<128x128xf32>
    %30 = arith.mulf %29, %28 : vector<128x128xf32>
    %31 = arith.maximumf %28, %30 : vector<128x128xf32>
    %32 = arith.index_cast %c0_i32 : i32 to index
    %c0_16 = arith.constant 0 : index
    %c0_17 = arith.constant 0 : index
    %33 = vector.load %arg8[%32, %c0_16, %c0_17] : memref<2x128x128xi8, #tpu.memory_space<vmem>>, vector<1x128x128xi8>
    %34 = vector.shape_cast %33 : vector<1x128x128xi8> to vector<128x128xi8>
    %c0_i8 = arith.constant 0 : i8
    %35 = vector.broadcast %c0_i8 : i8 to vector<128x128xi8>
    %36 = arith.cmpi ne, %34, %35 : vector<128x128xi8>
    %cst_18 = arith.constant -1.000000e+30 : f32
    %37 = vector.broadcast %cst_18 : f32 to vector<128x128xf32>
    %38 = arith.select %36, %31, %37 : vector<128x128xi1>, vector<128x128xf32>
    %cst_19 = arith.constant dense<0xFF800000> : vector<128xf32>
    %39 = vector.multi_reduction <maximumf>, %38, %cst_19 [1] : vector<128x128xf32> to vector<128xf32>
    %40 = vector.shape_cast %39 : vector<128xf32> to vector<128x1xf32>
    %41 = vector.broadcast %40 : vector<128x1xf32> to vector<128x128xf32>
    %42 = arith.subf %38, %41 : vector<128x128xf32>
    %43 = math.exp %42 : vector<128x128xf32>
    %cst_20 = arith.constant dense<0.000000e+00> : vector<128xf32>
    %44 = vector.multi_reduction <add>, %43, %cst_20 [1] : vector<128x128xf32> to vector<128xf32>
    %45 = vector.shape_cast %44 : vector<128xf32> to vector<128x1xf32>
    %46 = tpu.reciprocal %45 {approx = true} : vector<128x1xf32> -> vector<128x1xf32>
    %47 = vector.broadcast %46 : vector<128x1xf32> to vector<128x128xf32>
    %48 = arith.mulf %43, %47 : vector<128x128xf32>
    %49 = arith.truncf %48 : vector<128x128xf32> to vector<128x128xbf16>
    %cst_21 = arith.constant dense<0.000000e+00> : vector<128x32xf32>
    %50 = tpu.matmul %49, %23, %cst_21 {dimension_numbers = #tpu.dot_dimension_numbers<[1], [0], [0], [1], [0, 0, 1, 1], [], []>} : vector<128x128xbf16>, vector<128x32xbf16>, vector<128x32xf32> -> vector<128x32xf32>
    %51 = arith.index_cast %8 : i32 to index
    %c0_22 = arith.constant 0 : index
    %52 = vector.load %arg9[%51, %c0_22] : memref<256x32xf32, #tpu.memory_space<vmem>>, vector<128x32xf32>
    tpu.vector_store %arg9[%51, %c0_22], %50 {strides = array<i32>} : memref<256x32xf32, #tpu.memory_space<vmem>>, vector<128x32xf32>,
    %c1_i32 = arith.constant 1 : i32
    %c128_i32_23 = arith.constant 128 : i32
    %53 = arith.muli %c1_i32, %c128_i32_23 : i32
    %54 = tpu.assume_multiple %53, 128 : i32
    %55 = arith.index_cast %54 : i32 to index
    %c0_24 = arith.constant 0 : index
    %56 = vector.load %arg1[%55, %c0_24] : memref<256x32xbf16, #tpu.memory_space<vmem>>, vector<128x32xbf16>
    %57 = arith.index_cast %54 : i32 to index
    %c0_25 = arith.constant 0 : index
    %58 = vector.load %arg2[%57, %c0_25] : memref<256x1xi32, #tpu.memory_space<vmem>>, vector<128x1xi32>
    %cst_26 = arith.constant dense<0.000000e+00> : vector<128x224xf32>
    %59 = tpu.matmul %56, %0, %cst_26 {dimension_numbers = #tpu.dot_dimension_numbers<[1], [0], [0], [1], [0, 0, 1, 1], [], []>} : vector<128x32xbf16>, vector<32x224xbf16>, vector<128x224xf32> -> vector<128x224xf32>
    %60 = vector.broadcast %6 : vector<1x224xi32> to vector<128x224xi32>
    %61 = vector.broadcast %58 : vector<128x1xi32> to vector<128x224xi32>
    %62 = arith.cmpi eq, %60, %61 : vector<128x224xi32>
    %cst_27 = arith.constant 0.000000e+00 : f32
    %63 = vector.broadcast %cst_27 : f32 to vector<128x224xf32>
    %64 = arith.select %62, %59, %63 : vector<128x224xi1>, vector<128x224xf32>
    %65 = arith.extf %56 : vector<128x32xbf16> to vector<128x32xf32>
    %66 = arith.truncf %64 : vector<128x224xf32> to vector<128x224xbf16>
    %cst_28 = arith.constant dense<0.000000e+00> : vector<128x32xf32>
    %67 = tpu.matmul %66, %1, %cst_28 {dimension_numbers = #tpu.dot_dimension_numbers<[1], [0], [0], [1], [0, 0, 1, 1], [], []>} : vector<128x224xbf16>, vector<224x32xbf16>, vector<128x32xf32> -> vector<128x32xf32>
    %68 = arith.addf %65, %67 : vector<128x32xf32>
    %69 = arith.truncf %68 : vector<128x32xf32> to vector<128x32xbf16>
    %cst_29 = arith.constant dense<0.000000e+00> : vector<128x1xf32>
    %70 = tpu.matmul %69, %3, %cst_29 {dimension_numbers = #tpu.dot_dimension_numbers<[1], [0], [0], [1], [0, 0, 1, 1], [], []>} : vector<128x32xbf16>, vector<32x1xbf16>, vector<128x1xf32> -> vector<128x1xf32>
    %cst_30 = arith.constant dense<0.000000e+00> : vector<1x128xf32>
    %71 = tpu.matmul %5, %69, %cst_30 {dimension_numbers = #tpu.dot_dimension_numbers<[1], [1], [0], [0], [0, 0, 1, 0], [], []>} : vector<1x32xbf16>, vector<128x32xbf16>, vector<1x128xf32> -> vector<1x128xf32>
    %72 = vector.broadcast %70 : vector<128x1xf32> to vector<128x128xf32>
    %73 = vector.broadcast %71 : vector<1x128xf32> to vector<128x128xf32>
    %74 = arith.addf %72, %73 : vector<128x128xf32>
    %cst_31 = arith.constant 2.000000e-01 : f32
    %75 = vector.broadcast %cst_31 : f32 to vector<128x128xf32>
    %76 = arith.mulf %75, %74 : vector<128x128xf32>
    %77 = arith.maximumf %74, %76 : vector<128x128xf32>
    %78 = arith.index_cast %c1_i32 : i32 to index
    %c0_32 = arith.constant 0 : index
    %c0_33 = arith.constant 0 : index
    %79 = vector.load %arg8[%78, %c0_32, %c0_33] : memref<2x128x128xi8, #tpu.memory_space<vmem>>, vector<1x128x128xi8>
    %80 = vector.shape_cast %79 : vector<1x128x128xi8> to vector<128x128xi8>
    %c0_i8_34 = arith.constant 0 : i8
    %81 = vector.broadcast %c0_i8_34 : i8 to vector<128x128xi8>
    %82 = arith.cmpi ne, %80, %81 : vector<128x128xi8>
    %cst_35 = arith.constant -1.000000e+30 : f32
    %83 = vector.broadcast %cst_35 : f32 to vector<128x128xf32>
    %84 = arith.select %82, %77, %83 : vector<128x128xi1>, vector<128x128xf32>
    %cst_36 = arith.constant dense<0xFF800000> : vector<128xf32>
    %85 = vector.multi_reduction <maximumf>, %84, %cst_36 [1] : vector<128x128xf32> to vector<128xf32>
    %86 = vector.shape_cast %85 : vector<128xf32> to vector<128x1xf32>
    %87 = vector.broadcast %86 : vector<128x1xf32> to vector<128x128xf32>
    %88 = arith.subf %84, %87 : vector<128x128xf32>
    %89 = math.exp %88 : vector<128x128xf32>
    %cst_37 = arith.constant dense<0.000000e+00> : vector<128xf32>
    %90 = vector.multi_reduction <add>, %89, %cst_37 [1] : vector<128x128xf32> to vector<128xf32>
    %91 = vector.shape_cast %90 : vector<128xf32> to vector<128x1xf32>
    %92 = tpu.reciprocal %91 {approx = true} : vector<128x1xf32> -> vector<128x1xf32>
    %93 = vector.broadcast %92 : vector<128x1xf32> to vector<128x128xf32>
    %94 = arith.mulf %89, %93 : vector<128x128xf32>
    %95 = arith.truncf %94 : vector<128x128xf32> to vector<128x128xbf16>
    %cst_38 = arith.constant dense<0.000000e+00> : vector<128x32xf32>
    %96 = tpu.matmul %95, %69, %cst_38 {dimension_numbers = #tpu.dot_dimension_numbers<[1], [0], [0], [1], [0, 0, 1, 1], [], []>} : vector<128x128xbf16>, vector<128x32xbf16>, vector<128x32xf32> -> vector<128x32xf32>
    %97 = arith.index_cast %54 : i32 to index
    %c0_39 = arith.constant 0 : index
    %98 = vector.load %arg9[%97, %c0_39] : memref<256x32xf32, #tpu.memory_space<vmem>>, vector<128x32xf32>
    tpu.vector_store %arg9[%97, %c0_39], %96 {strides = array<i32>} : memref<256x32xf32, #tpu.memory_space<vmem>>, vector<128x32xf32>,
    %c2_i32 = arith.constant 2 : i32
    return
  }
  func.func @transform_0(%arg0: i32) -> (i32, i32) {
    %c0_i32 = arith.constant 0 : i32
    %c0_i32_0 = arith.constant 0 : i32
    return %arg0, %c0_i32 : i32, i32
  }
  func.func @transform_1(%arg0: i32) -> (i32, i32) {
    %c0_i32 = arith.constant 0 : i32
    %c0_i32_0 = arith.constant 0 : i32
    return %arg0, %c0_i32 : i32, i32
  }
  func.func @transform_2(%arg0: i32) -> (i32, i32) {
    %c0_i32 = arith.constant 0 : i32
    %c0_i32_0 = arith.constant 0 : i32
    %c0_i32_1 = arith.constant 0 : i32
    return %c0_i32, %c0_i32_0 : i32, i32
  }
  func.func @transform_3(%arg0: i32) -> (i32, i32) {
    %c0_i32 = arith.constant 0 : i32
    %c0_i32_0 = arith.constant 0 : i32
    %c0_i32_1 = arith.constant 0 : i32
    return %c0_i32, %c0_i32_0 : i32, i32
  }
  func.func @transform_4(%arg0: i32) -> (i32, i32) {
    %c0_i32 = arith.constant 0 : i32
    %c0_i32_0 = arith.constant 0 : i32
    %c0_i32_1 = arith.constant 0 : i32
    return %c0_i32, %c0_i32_0 : i32, i32
  }
  func.func @transform_5(%arg0: i32) -> (i32, i32) {
    %c0_i32 = arith.constant 0 : i32
    %c0_i32_0 = arith.constant 0 : i32
    %c0_i32_1 = arith.constant 0 : i32
    return %c0_i32, %c0_i32_0 : i32, i32
  }
  func.func @transform_6(%arg0: i32) -> (i32, i32) {
    %c0_i32 = arith.constant 0 : i32
    %c0_i32_0 = arith.constant 0 : i32
    %c0_i32_1 = arith.constant 0 : i32
    return %c0_i32, %c0_i32_0 : i32, i32
  }
  func.func @transform_7(%arg0: i32) -> (i32, i32, i32) {
    %c0_i32 = arith.constant 0 : i32
    %c0_i32_0 = arith.constant 0 : i32
    %c0_i32_1 = arith.constant 0 : i32
    return %arg0, %c0_i32, %c0_i32_0 : i32, i32, i32
  }
  func.func @transform_8(%arg0: i32) -> (i32, i32) {
    %c0_i32 = arith.constant 0 : i32
    %c0_i32_0 = arith.constant 0 : i32
    return %arg0, %c0_i32 : i32, i32
  }
}

</mosaic_0001>

<llo_original>
// kernel: tpu_custom_call.1
$region0: #{tpu_custom_call.1}
  #allocation0 [shape = 'u32[]', space=smem, size = 0x4, offset = 0x4, fixed_abs, tag = 'smem constant byte address 0x4 - core index']
  #allocation1 [shape = 'u32[144,128]{1,0:T(1,128)}', space=vmem, size = 0x12000, scoped, tag = 'internal scratch']
  %s0 = inlined_call_operand.vmem [shape: bf16[512,32], index: 0, kind: input, shape index: {}]
  %s1 = inlined_call_operand.vmem [shape: s32[512,1], index: 1, kind: input, shape index: {}]
  %s2 = inlined_call_operand.vmem [shape: s32[1,224], index: 2, kind: input, shape index: {}]
  %s3 = inlined_call_operand.vmem [shape: bf16[32,224], index: 3, kind: input, shape index: {}]
  %s4 = inlined_call_operand.vmem [shape: bf16[224,32], index: 4, kind: input, shape index: {}]
  %s5 = inlined_call_operand.vmem [shape: f32[32,1], index: 5, kind: input, shape index: {}]
  %s6 = inlined_call_operand.vmem [shape: f32[1,32], index: 6, kind: input, shape index: {}]
  %s7 = inlined_call_operand.vmem [shape: s8[4,128,128], index: 7, kind: input, shape index: {}]
  %s8 = inlined_call_operand.vmem [shape: f32[512,32], index: 8, kind: output, shape index: {}]
  %s9 = sld [smem:[#allocation0]]
  $region65: #{tpu_custom_call.1} parent=0
    _
  %s11 = ssub.s32 1, %s9
  %s12 = scalar_select 0, %s11, %s9
  loop: start=0, step=1, limit=4
  $region2: #{tpu_custom_call.1} parent=0 // loop_pre_header
    _
  $region3: #{tpu_custom_call.1} parent=0 // loop_header
    %s14 = sphi 0, %s18
    %p15 = scmp.ge.s32.totalorder %s14, 4
    %s24 = sphi 0, %s26
    %s27 = sphi 0, %s24
    %s28 = sphi 0, %s27
    %s44 = sphi 0, %s28
    %s50 = sphi 0, %s52
    %s53 = sphi 0, %s50
    %s54 = sphi 0, %s53
    %s70 = sphi 0, %s54
    %s74 = sphi 0, %s74
    %s76 = sphi 0, %s74
    %s77 = sphi 0, %s76
    %s91 = sphi 0, %s77
    %s95 = sphi 0, %s95
    %s97 = sphi 0, %s95
    %s98 = sphi 0, %s97
    %s112 = sphi 0, %s98
    %s116 = sphi 0, %s116
    %s118 = sphi 0, %s116
    %s119 = sphi 0, %s118
    %s133 = sphi 0, %s119
    %s137 = sphi 0, %s137
    %s139 = sphi 0, %s137
    %s140 = sphi 0, %s139
    %s154 = sphi 0, %s140
    %s158 = sphi 0, %s158
    %s160 = sphi 0, %s158
    %s161 = sphi 0, %s160
    %s175 = sphi 0, %s161
    %s181 = sphi 0, %s183
    %s184 = sphi 0, %s181
    %s185 = sphi 0, %s184
    %s201 = sphi 0, %s185
    %s207 = sphi 0, %s209
    %s210 = sphi 0, %s207
    %s211 = sphi 0, %s210
    %s227 = sphi 0, %s211
  $region4: #{tpu_custom_call.1} parent=0 // loop_header_branch
    %17 = sbr.rel (%p15) target = $region8
  $region5: #{tpu_custom_call.1} parent=0 // loop_body
    %s19 = ssub.s32 %s14, 1
    %s20 = ssub.s32 %s14, 2
    %s21 = sadd.s32 %s14, 1
    %s22 = ssub.s32 %s14, %s21
    %p23 = scmp.eq.s32.totalorder %s22, 0
    %s25 = sadd.s32 %s24, 1
    %s26 = scalar_select %p23, %s24, %s25
    %p29 = pneg %p23
    %p30 = scmp.eq.s32.totalorder %s14, 1
    %p31 = por %p29, %p30
    %p32 = scmp.ne.s32.totalorder %s24, %s27
    %p33 = scmp.eq.s32.totalorder %s14, 0
    %p34 = por %p32, %p33
    %p35 = scmp.ne.s32.totalorder %s24, %s27
    %p36 = scmp.eq.s32.totalorder %s19, 1
    %p37 = por %p35, %p36
    %p38 = scmp.ne.s32.totalorder %s27, %s28
    %p39 = scmp.eq.s32.totalorder %s19, 0
    %p40 = por %p38, %p39
    %p41 = scmp.ne.s32.totalorder %s27, %s28
    %p42 = scmp.eq.s32.totalorder %s20, 1
    %p43 = por %p41, %p42
    %p45 = scmp.ne.s32.totalorder %s28, %s44
    %p46 = scmp.eq.s32.totalorder %s20, 0
    %p47 = por %p45, %p46
    %s48 = ssub.s32 %s14, %s21
    %p49 = scmp.eq.s32.totalorder %s48, 0
    %s51 = sadd.s32 %s50, 1
    %s52 = scalar_select %p49, %s50, %s51
    %p55 = pneg %p49
    %p56 = scmp.eq.s32.totalorder %s14, 1
    %p57 = por %p55, %p56
    %p58 = scmp.ne.s32.totalorder %s50, %s53
    %p59 = scmp.eq.s32.totalorder %s14, 0
    %p60 = por %p58, %p59
    %p61 = scmp.ne.s32.totalorder %s50, %s53
    %p62 = scmp.eq.s32.totalorder %s19, 1
    %p63 = por %p61, %p62
    %p64 = scmp.ne.s32.totalorder %s53, %s54
    %p65 = scmp.eq.s32.totalorder %s19, 0
    %p66 = por %p64, %p65
    %p67 = scmp.ne.s32.totalorder %s53, %s54
    %p68 = scmp.eq.s32.totalorder %s20, 1
    %p69 = por %p67, %p68
    %p71 = scmp.ne.s32.totalorder %s54, %s70
    %p72 = scmp.eq.s32.totalorder %s20, 0
    %p73 = por %p71, %p72
    %s75 = sadd.s32 %s74, 1
    %p78 = scmp.eq.s32.totalorder %s14, 1
    %p79 = scmp.ne.s32.totalorder %s74, %s76
    %p80 = scmp.eq.s32.totalorder %s14, 0
    %p81 = por %p79, %p80
    %p82 = scmp.ne.s32.totalorder %s74, %s76
    %p83 = scmp.eq.s32.totalorder %s19, 1
    %p84 = por %p82, %p83
    %p85 = scmp.ne.s32.totalorder %s76, %s77
    %p86 = scmp.eq.s32.totalorder %s19, 0
    %p87 = por %p85, %p86
    %p88 = scmp.ne.s32.totalorder %s76, %s77
    %p89 = scmp.eq.s32.totalorder %s20, 1
    %p90 = por %p88, %p89
    %p92 = scmp.ne.s32.totalorder %s77, %s91
    %p93 = scmp.eq.s32.totalorder %s20, 0
    %p94 = por %p92, %p93
    %s96 = sadd.s32 %s95, 1
    %p99 = scmp.eq.s32.totalorder %s14, 1
    %p100 = scmp.ne.s32.totalorder %s95, %s97
    %p101 = scmp.eq.s32.totalorder %s14, 0
    %p102 = por %p100, %p101
    %p103 = scmp.ne.s32.totalorder %s95, %s97
    %p104 = scmp.eq.s32.totalorder %s19, 1
    %p105 = por %p103, %p104
    %p106 = scmp.ne.s32.totalorder %s97, %s98
    %p107 = scmp.eq.s32.totalorder %s19, 0
    %p108 = por %p106, %p107
    %p109 = scmp.ne.s32.totalorder %s97, %s98
    %p110 = scmp.eq.s32.totalorder %s20, 1
    %p111 = por %p109, %p110
    %p113 = scmp.ne.s32.totalorder %s98, %s112
    %p114 = scmp.eq.s32.totalorder %s20, 0
    %p115 = por %p113, %p114
    %s117 = sadd.s32 %s116, 1
    %p120 = scmp.eq.s32.totalorder %s14, 1
    %p121 = scmp.ne.s32.totalorder %s116, %s118
    %p122 = scmp.eq.s32.totalorder %s14, 0
    %p123 = por %p121, %p122
    %p124 = scmp.ne.s32.totalorder %s116, %s118
    %p125 = scmp.eq.s32.totalorder %s19, 1
    %p126 = por %p124, %p125
    %p127 = scmp.ne.s32.totalorder %s118, %s119
    %p128 = scmp.eq.s32.totalorder %s19, 0
    %p129 = por %p127, %p128
    %p130 = scmp.ne.s32.totalorder %s118, %s119
    %p131 = scmp.eq.s32.totalorder %s20, 1
    %p132 = por %p130, %p131
    %p134 = scmp.ne.s32.totalorder %s119, %s133
    %p135 = scmp.eq.s32.totalorder %s20, 0
    %p136 = por %p134, %p135
    %s138 = sadd.s32 %s137, 1
    %p141 = scmp.eq.s32.totalorder %s14, 1
    %p142 = scmp.ne.s32.totalorder %s137, %s139
    %p143 = scmp.eq.s32.totalorder %s14, 0
    %p144 = por %p142, %p143
    %p145 = scmp.ne.s32.totalorder %s137, %s139
    %p146 = scmp.eq.s32.totalorder %s19, 1
    %p147 = por %p145, %p146
    %p148 = scmp.ne.s32.totalorder %s139, %s140
    %p149 = scmp.eq.s32.totalorder %s19, 0
    %p150 = por %p148, %p149
    %p151 = scmp.ne.s32.totalorder %s139, %s140
    %p152 = scmp.eq.s32.totalorder %s20, 1
    %p153 = por %p151, %p152
    %p155 = scmp.ne.s32.totalorder %s140, %s154
    %p156 = scmp.eq.s32.totalorder %s20, 0
    %p157 = por %p155, %p156
    %s159 = sadd.s32 %s158, 1
    %p162 = scmp.eq.s32.totalorder %s14, 1
    %p163 = scmp.ne.s32.totalorder %s158, %s160
    %p164 = scmp.eq.s32.totalorder %s14, 0
    %p165 = por %p163, %p164
    %p166 = scmp.ne.s32.totalorder %s158, %s160
    %p167 = scmp.eq.s32.totalorder %s19, 1
    %p168 = por %p166, %p167
    %p169 = scmp.ne.s32.totalorder %s160, %s161
    %p170 = scmp.eq.s32.totalorder %s19, 0
    %p171 = por %p169, %p170
    %p172 = scmp.ne.s32.totalorder %s160, %s161
    %p173 = scmp.eq.s32.totalorder %s20, 1
    %p174 = por %p172, %p173
    %p176 = scmp.ne.s32.totalorder %s161, %s175
    %p177 = scmp.eq.s32.totalorder %s20, 0
    %p178 = por %p176, %p177
    %s179 = ssub.s32 %s14, %s21
    %p180 = scmp.eq.s32.totalorder %s179, 0
    %s182 = sadd.s32 %s181, 1
    %s183 = scalar_select %p180, %s181, %s182
    %p186 = pneg %p180
    %p187 = scmp.eq.s32.totalorder %s14, 1
    %p188 = por %p186, %p187
    %p189 = scmp.ne.s32.totalorder %s181, %s184
    %p190 = scmp.eq.s32.totalorder %s14, 0
    %p191 = por %p189, %p190
    %p192 = scmp.ne.s32.totalorder %s181, %s184
    %p193 = scmp.eq.s32.totalorder %s19, 1
    %p194 = por %p192, %p193
    %p195 = scmp.ne.s32.totalorder %s184, %s185
    %p196 = scmp.eq.s32.totalorder %s19, 0
    %p197 = por %p195, %p196
    %p198 = scmp.ne.s32.totalorder %s184, %s185
    %p199 = scmp.eq.s32.totalorder %s20, 1
    %p200 = por %p198, %p199
    %p202 = scmp.ne.s32.totalorder %s185, %s201
    %p203 = scmp.eq.s32.totalorder %s20, 0
    %p204 = por %p202, %p203
    %s205 = ssub.s32 %s14, %s21
    %p206 = scmp.eq.s32.totalorder %s205, 0
    %s208 = sadd.s32 %s207, 1
    %s209 = scalar_select %p206, %s207, %s208
    %p212 = pneg %p206
    %p213 = scmp.eq.s32.totalorder %s14, 1
    %p214 = por %p212, %p213
    %p215 = scmp.ne.s32.totalorder %s207, %s210
    %p216 = scmp.eq.s32.totalorder %s14, 0
    %p217 = por %p215, %p216
    %p218 = scmp.ne.s32.totalorder %s207, %s210
    %p219 = scmp.eq.s32.totalorder %s19, 1
    %p220 = por %p218, %p219
    %p221 = scmp.ne.s32.totalorder %s210, %s211
    %p222 = scmp.eq.s32.totalorder %s19, 0
    %p223 = por %p221, %p222
    %p224 = scmp.ne.s32.totalorder %s210, %s211
    %p225 = scmp.eq.s32.totalorder %s20, 1
    %p226 = por %p224, %p225
    %p228 = scmp.ne.s32.totalorder %s211, %s227
    %p229 = scmp.eq.s32.totalorder %s20, 0
    %p230 = por %p228, %p229
    %p231 = scmp.le.s32.totalorder 1, %s14
    %p232 = scmp.lt.s32.totalorder %s14, 3
    %p233 = pnand %p231, %p232
    %p234 = pneg %p233
    // Predicated region
    $region9: #{tpu_custom_call.1} parent=5 // pred_check
      _
    $region10: #{tpu_custom_call.1} parent=5 // pred_check_branch
      %236 = sbr.rel (%p233) target = $region12
    $region11: #{tpu_custom_call.1} parent=5 // pred_region
      %s237 = ssub.s32 %s14, 1
      // Predicated region
      $region13: #{tpu_custom_call.1} parent=11 // pred_check
        %p238 = pneg %p87
      $region14: #{tpu_custom_call.1} parent=11 // pred_check_branch
        %240 = sbr.rel (%p238) target = $region16
      $region15: #{tpu_custom_call.1} parent=11 // pred_region
        _
      $region16: #{tpu_custom_call.1} parent=11 // pred_fallthru
        _
      // Predicated region
      $region17: #{tpu_custom_call.1} parent=11 // pred_check
        %p241 = pneg %p108
      $region18: #{tpu_custom_call.1} parent=11 // pred_check_branch
        %243 = sbr.rel (%p241) target = $region20
      $region19: #{tpu_custom_call.1} parent=11 // pred_region
        _
      $region20: #{tpu_custom_call.1} parent=11 // pred_fallthru
        _
      // Predicated region
      $region21: #{tpu_custom_call.1} parent=11 // pred_check
        %p244 = pneg %p129
      $region22: #{tpu_custom_call.1} parent=11 // pred_check_branch
        %246 = sbr.rel (%p244) target = $region24
      $region23: #{tpu_custom_call.1} parent=11 // pred_region
        _
      $region24: #{tpu_custom_call.1} parent=11 // pred_fallthru
        _
      // Predicated region
      $region25: #{tpu_custom_call.1} parent=11 // pred_check
        %p247 = pneg %p150
      $region26: #{tpu_custom_call.1} parent=11 // pred_check_branch
        %249 = sbr.rel (%p247) target = $region28
      $region27: #{tpu_custom_call.1} parent=11 // pred_region
        _
      $region28: #{tpu_custom_call.1} parent=11 // pred_fallthru
        _
      // Predicated region
      $region29: #{tpu_custom_call.1} parent=11 // pred_check
        %p250 = pneg %p171
      $region30: #{tpu_custom_call.1} parent=11 // pred_check_branch
        %252 = sbr.rel (%p250) target = $region32
      $region31: #{tpu_custom_call.1} parent=11 // pred_region
        _
      $region32: #{tpu_custom_call.1} parent=11 // pred_fallthru
        _
    $region12: #{tpu_custom_call.1} parent=5 // pred_fallthru
      _
    %p253 = scmp.lt.s32.totalorder %s14, 2
    // Predicated region
    $region33: #{tpu_custom_call.1} parent=5 // pred_check
      %p254 = pneg %p253
    $region34: #{tpu_custom_call.1} parent=5 // pred_check_branch
      %256 = sbr.rel (%p254) target = $region36
    $region35: #{tpu_custom_call.1} parent=5 // pred_region
      // Predicated region
      $region37: #{tpu_custom_call.1} parent=35 // pred_check
        %p257 = pneg %p34
      $region38: #{tpu_custom_call.1} parent=35 // pred_check_branch
        %259 = sbr.rel (%p257) target = $region40
      $region39: #{tpu_custom_call.1} parent=35 // pred_region
        %s260 = smul.u32 32, %s14
        %p261 = scmp.lt.s32.totalorder %s260, 63
        %s262 = scalar_select %p261, %s260, 63
        %s263 = smul.addr %s262, 4
        %s264 = scalar_lea.vmem %s0, %s263
        %s265 = smul.u32 32, %s14
      $region40: #{tpu_custom_call.1} parent=35 // pred_fallthru
        _
      // Predicated region
      $region41: #{tpu_custom_call.1} parent=35 // pred_check
        %p266 = pneg %p60
      $region42: #{tpu_custom_call.1} parent=35 // pred_check_branch
        %268 = sbr.rel (%p266) target = $region44
      $region43: #{tpu_custom_call.1} parent=35 // pred_region
        %s269 = smul.u32 32, %s14
        %p270 = scmp.lt.s32.totalorder %s269, 63
        %s271 = scalar_select %p270, %s269, 63
        %s272 = smul.addr %s271, 8
        %s273 = scalar_lea.vmem %s1, %s272
        %s274 = smul.u32 32, %s14
      $region44: #{tpu_custom_call.1} parent=35 // pred_fallthru
        _
      // Predicated region
      $region45: #{tpu_custom_call.1} parent=35 // pred_check
        %p275 = pneg %p191
      $region46: #{tpu_custom_call.1} parent=35 // pred_check_branch
        %277 = sbr.rel (%p275) target = $region48
      $region47: #{tpu_custom_call.1} parent=35 // pred_region
        %s278 = smul.u32 2, %s14
        %p279 = scmp.lt.s32.totalorder %s278, 3
        %s280 = scalar_select %p279, %s278, 3
        %s281 = smul.addr %s280, 4
        %s282 = smul.addr %s281, 8
        %s283 = scalar_lea.vmem %s7, %s282
        %s284 = smul.u32 2, %s14
      $region48: #{tpu_custom_call.1} parent=35 // pred_fallthru
        _
    $region36: #{tpu_custom_call.1} parent=5 // pred_fallthru
      _
    %p285 = scmp.le.s32.totalorder 1, %s14
    %p286 = scmp.lt.s32.totalorder %s14, 3
    %p287 = pnand %p285, %p286
    %p288 = pneg %p287
    // Predicated region
    $region49: #{tpu_custom_call.1} parent=5 // pred_check
      _
    $region50: #{tpu_custom_call.1} parent=5 // pred_check_branch
      %290 = sbr.rel (%p287) target = $region52
    $region51: #{tpu_custom_call.1} parent=5 // pred_region
      %s291 = ssub.s32 %s14, 1
      %s292 = smul.u32 32, %s19
      %p293 = scmp.lt.s32.totalorder %s292, 63
      %s294 = scalar_select %p293, %s292, 63
      %s295 = smul.addr %s294, 4
      %s296 = scalar_lea.vmem %s0, %s295
      %p297 = pneg %p40
      %p298 = pneg %p37
      %s299 = smul.u32 32, %s19
      %p300 = scmp.lt.s32.totalorder %s299, 63
      %s301 = scalar_select %p300, %s299, 63
      %s302 = smul.addr %s301, 8
      %s303 = scalar_lea.vmem %s1, %s302
      %p304 = pneg %p66
      %p305 = pneg %p63
      %p306 = pneg %p87
      %p307 = pneg %p84
      %p308 = pneg %p108
      %p309 = pneg %p105
      %p310 = pneg %p129
      %p311 = pneg %p126
      %p312 = pneg %p150
      %p313 = pneg %p147
      %p314 = pneg %p171
      %p315 = pneg %p168
      %s316 = smul.u32 2, %s19
      %p317 = scmp.lt.s32.totalorder %s316, 3
      %s318 = scalar_select %p317, %s316, 3
      %s319 = smul.addr %s318, 4
      %s320 = smul.addr %s319, 8
      %s321 = scalar_lea.vmem %s7, %s320
      %p322 = pneg %p197
      %p323 = pneg %p194
      %p324 = pneg %p223
      %p325 = pneg %p220
      %s326 = smul.u32 32, %s19
      %p327 = scmp.lt.s32.totalorder %s326, 63
      %s328 = scalar_select %p327, %s326, 63
      %s329 = smul.addr %s328, 8
      %s330 = scalar_lea.vmem %s8, %s329
      %s331 = smul.u32 32, %s19
      %p332 = scmp.lt.s32.totalorder %s331, 63
      %s333 = scalar_select %p332, %s331, 63
      %s334 = smul.addr %s333, 4
      %s335 = scalar_lea.vmem %s0, %s334
      %s336 = smul.u32 32, %s19
      %s337 = smul.u32 32, %s19
      %p338 = scmp.lt.s32.totalorder %s337, 63
      %s339 = scalar_select %p338, %s337, 63
      %s340 = smul.addr %s339, 8
      %s341 = scalar_lea.vmem %s1, %s340
      %s342 = smul.u32 32, %s19
      %s343 = smul.u32 2, %s19
      %p344 = scmp.lt.s32.totalorder %s343, 3
      %s345 = scalar_select %p344, %s343, 3
      %s346 = smul.addr %s345, 4
      %s347 = smul.addr %s346, 8
      %s348 = scalar_lea.vmem %s7, %s347
      %s349 = smul.u32 2, %s19
      %s350 = smul.u32 32, %s19
      %p351 = scmp.lt.s32.totalorder %s350, 63
      %s352 = scalar_select %p351, %s350, 63
      %s353 = smul.addr %s352, 8
      %s354 = scalar_lea.vmem %s8, %s353
      %s355 = smul.u32 32, %s19
      %v359 = vld [vmem:[%s3] sm:$0xff]
      %v360 = vld [vmem:[%s3 + $0x8] sm:$0xff]
      %v361 = vld [vmem:[%s3 + $0x10] sm:$0xff]
      %v362 = vld [vmem:[%s3 + $0x18] sm:$0xff]
      %v363 = vld [vmem:[%s4] sm:$0xf]
      %v364 = vld [vmem:[%s4 + $0x4] sm:$0xf]
      %v365 = vld [vmem:[%s4 + $0x8] sm:$0xf]
      %v366 = vld [vmem:[%s4 + $0xc] sm:$0xf]
      %v367 = vld [vmem:[%s4 + $0x10] sm:$0xf]
      %v368 = vld [vmem:[%s4 + $0x14] sm:$0xf]
      %v369 = vld [vmem:[%s4 + $0x18] sm:$0xf]
      %v370 = vld [vmem:[%s4 + $0x1c] sm:$0xf]
      %v371 = vld [vmem:[%s4 + $0x20] sm:$0xf]
      %v372 = vld [vmem:[%s4 + $0x24] sm:$0xf]
      %v373 = vld [vmem:[%s4 + $0x28] sm:$0xf]
      %v374 = vld [vmem:[%s4 + $0x2c] sm:$0xf]
      %v375 = vld [vmem:[%s4 + $0x30] sm:$0xf]
      %v376 = vld [vmem:[%s4 + $0x34] sm:$0xf]
      %v377 = vld [vmem:[%s4 + $0x38] sm:$0xf]
      %v378 = vld [vmem:[%s4 + $0x3c] sm:$0xf]
      %v379 = vld [vmem:[%s4 + $0x40] sm:$0xf]
      %v380 = vld [vmem:[%s4 + $0x44] sm:$0xf]
      %v381 = vld [vmem:[%s4 + $0x48] sm:$0xf]
      %v382 = vld [vmem:[%s4 + $0x4c] sm:$0xf]
      %v383 = vld [vmem:[%s4 + $0x50] sm:$0xf]
      %v384 = vld [vmem:[%s4 + $0x54] sm:$0xf]
      %v385 = vld [vmem:[%s4 + $0x58] sm:$0xf]
      %v386 = vld [vmem:[%s4 + $0x5c] sm:$0xf]
      %v387 = vld [vmem:[%s4 + $0x60] sm:$0xf]
      %v388 = vld [vmem:[%s4 + $0x64] sm:$0xf]
      %v389 = vld [vmem:[%s4 + $0x68] sm:$0xf]
      %v390 = vld [vmem:[%s4 + $0x6c] sm:$0xf]
      %v391 = vld [vmem:[%s5] sm:$0xff]
      %v392 = vld [vmem:[%s5 + $0x8] sm:$0xff]
      %v393 = vld [vmem:[%s5 + $0x10] sm:$0xff]
      %v394 = vld [vmem:[%s5 + $0x18] sm:$0xff]
      %v395 = vpack.c.bf16 %v392, %v391
      %v396 = vpack.c.bf16 %v394, %v393
      %v397 = vld [vmem:[%s6] sm:$0x1]
      %v398 = vpack.c.bf16 %v397, %v397
      %v399 = vld [vmem:[%s2] sm:$0x3]
      %v400 = vld [vmem:[%s335] sm:$0xf]
      %v401 = vld [vmem:[%s335 + $0x4] sm:$0xf]
      %v402 = vld [vmem:[%s335 + $0x8] sm:$0xf]
      %v403 = vld [vmem:[%s335 + $0xc] sm:$0xf]
      %v404 = vld [vmem:[%s335 + $0x10] sm:$0xf]
      %v405 = vld [vmem:[%s335 + $0x14] sm:$0xf]
      %v406 = vld [vmem:[%s335 + $0x18] sm:$0xf]
      %v407 = vld [vmem:[%s335 + $0x1c] sm:$0xf]
      %v408 = vld [vmem:[%s335 + $0x20] sm:$0xf]
      %v409 = vld [vmem:[%s335 + $0x24] sm:$0xf]
      %v410 = vld [vmem:[%s335 + $0x28] sm:$0xf]
      %v411 = vld [vmem:[%s335 + $0x2c] sm:$0xf]
      %v412 = vld [vmem:[%s335 + $0x30] sm:$0xf]
      %v413 = vld [vmem:[%s335 + $0x34] sm:$0xf]
      %v414 = vld [vmem:[%s335 + $0x38] sm:$0xf]
      %v415 = vld [vmem:[%s335 + $0x3c] sm:$0xf]
      %v416 = vld [vmem:[%s341] sm:$0xff]
      %v417 = vld [vmem:[%s341 + $0x8] sm:$0xff]
      %v418 = vld [vmem:[%s341 + $0x10] sm:$0xff]
      %v419 = vld [vmem:[%s341 + $0x18] sm:$0xff]
      %v420 = vld [vmem:[%s341 + $0x20] sm:$0xff]
      %v421 = vld [vmem:[%s341 + $0x28] sm:$0xff]
      %v422 = vld [vmem:[%s341 + $0x30] sm:$0xff]
      %v423 = vld [vmem:[%s341 + $0x38] sm:$0xff]
      %v424 = vld [vmem:[%s341 + $0x40] sm:$0xff]
      %v425 = vld [vmem:[%s341 + $0x48] sm:$0xff]
      %v426 = vld [vmem:[%s341 + $0x50] sm:$0xff]
      %v427 = vld [vmem:[%s341 + $0x58] sm:$0xff]
      %v428 = vld [vmem:[%s341 + $0x60] sm:$0xff]
      %v429 = vld [vmem:[%s341 + $0x68] sm:$0xff]
      %v430 = vld [vmem:[%s341 + $0x70] sm:$0xff]
      %v431 = vld [vmem:[%s341 + $0x78] sm:$0xff]
      %v448 = vunpack.c.l.b16 %v400
      %v449 = vunpack.c.l.b16 %v401
      %v450 = vunpack.c.l.b16 %v402
      %v451 = vunpack.c.l.b16 %v403
      %v452 = vunpack.c.l.b16 %v404
      %v453 = vunpack.c.l.b16 %v405
      %v454 = vunpack.c.l.b16 %v406
      %v455 = vunpack.c.l.b16 %v407
      %v456 = vunpack.c.l.b16 %v408
      %v457 = vunpack.c.l.b16 %v409
      %v458 = vunpack.c.l.b16 %v410
      %v459 = vunpack.c.l.b16 %v411
      %v460 = vunpack.c.l.b16 %v412
      %v461 = vunpack.c.l.b16 %v413
      %v462 = vunpack.c.l.b16 %v414
      %v463 = vunpack.c.l.b16 %v415
      %v464 = vpack.c.b16 %v449, %v448
      %v465 = vpack.c.b16 %v451, %v450
      %v466 = vpack.c.b16 %v453, %v452
      %v467 = vpack.c.b16 %v455, %v454
      %v468 = vpack.c.b16 %v457, %v456
      %v469 = vpack.c.b16 %v459, %v458
      %v470 = vpack.c.b16 %v461, %v460
      %v471 = vpack.c.b16 %v463, %v462
      %v476 = vunpack.c.l.b16 %v359
      %v477 = vunpack.c.h.b16 %v359
      %v478 = vunpack.c.l.b16 %v360
      %v479 = vunpack.c.h.b16 %v360
      %v480 = vunpack.c.l.b16 %v361
      %v481 = vunpack.c.h.b16 %v361
      %v482 = vunpack.c.l.b16 %v362
      %v483 = vunpack.c.h.b16 %v362
      %v484 = vpack.c.b16 %v478, %v476
      %v485 = vpack.c.b16 %v479, %v477
      %v486 = vpack.c.b16 %v482, %v480
      %v487 = vpack.c.b16 %v483, %v481
      %vm492 = vcmask 261120
      %v494 = vsel %vm492, %v464, 0
      %v497 = vsel %vm492, %v465, 0
      %v500 = vsel %vm492, %v466, 0
      %v503 = vsel %vm492, %v467, 0
      %v506 = vsel %vm492, %v468, 0
      %v509 = vsel %vm492, %v469, 0
      %v512 = vsel %vm492, %v470, 0
      %v515 = vsel %vm492, %v471, 0
      %517 = vmatprep.subr.bf16.mxu0 0
      %518 = vmatpush1.bf16.msra.mxu0 0
      %519 = vmatprep.subr.bf16.mxu0 0
      %520 = vmatpush1.bf16.msra.mxu0 0
      %521 = vmatprep.subr.bf16.mxu0 0
      %522 = vmatpush1.bf16.msra.mxu0 0
      %523 = vmatprep.subr.bf16.mxu0 0
      %524 = vmatpush1.bf16.msra.mxu0 0
      %525 = vmatprep.subr.bf16.mxu0 0
      %526 = vmatpush1.bf16.msra.mxu0 0
      %527 = vmatprep.subr.bf16.mxu0 0
      %528 = vmatpush1.bf16.msra.mxu0 0
      %529 = vmatprep.subr.bf16.mxu0 %v487
      %530 = vmatpush1.bf16.msra.mxu0 %v486
      %531 = vmatprep.subr.bf16.mxu0 %v485
      %532 = vmatpush1.bf16.msra.mxu0 %v484
      %533 = vmatprep.subr.bf16.mxu0 0
      %534 = vmatpush2.bf16.msra.mxu0 0
      %535 = vmatprep.subr.bf16.mxu0 0
      %536 = vmatpush2.bf16.msra.mxu0 0
      %537 = vmatprep.subr.bf16.mxu0 0
      %538 = vmatpush2.bf16.msra.mxu0 0
      %539 = vmatprep.subr.bf16.mxu0 0
      %540 = vmatpush2.bf16.msra.mxu0 0
      %541 = vmatprep.subr.bf16.mxu0 0
      %542 = vmatpush2.bf16.msra.mxu0 0
      %543 = vmatprep.subr.bf16.mxu0 0
      %544 = vmatpush2.bf16.msra.mxu0 0
      %545 = vmatprep.subr.bf16.mxu0 0
      %546 = vmatpush2.bf16.msra.mxu0 0
      %547 = vmatprep.subr.bf16.mxu0 0
      %548 = vmatpush2.bf16.msra.mxu0 0
      %549 = vmatprep.mubr.bf16.mxu0 0
      %550 = vmatmul.mubr.bf16.gmra.mxu0 %v494
      %v551 = vpop.f32.mrf.mxu0
      %v552 = vadd.f32 0.0, %v551
      %v553 = vpop.f32.mrf.mxu0
      %v554 = vadd.f32 0.0, %v553
      %v555 = vpop.f32.mrf.mxu0
      %v556 = vadd.f32 0.0, %v555
      %v557 = vpop.f32.mrf.mxu0
      %v558 = vadd.f32 0.0, %v557
      %559 = vmatprep.mubr.bf16.mxu0 0
      %560 = vmatmul.mubr.bf16.gmra.mxu0 %v497
      %v561 = vpop.f32.mrf.mxu0
      %v562 = vadd.f32 0.0, %v561
      %v563 = vpop.f32.mrf.mxu0
      %v564 = vadd.f32 0.0, %v563
      %v565 = vpop.f32.mrf.mxu0
      %v566 = vadd.f32 0.0, %v565
      %v567 = vpop.f32.mrf.mxu0
      %v568 = vadd.f32 0.0, %v567
      %569 = vmatprep.mubr.bf16.mxu0 0
      %570 = vmatmul.mubr.bf16.gmra.mxu0 %v500
      %v571 = vpop.f32.mrf.mxu0
      %v572 = vadd.f32 0.0, %v571
      %v573 = vpop.f32.mrf.mxu0
      %v574 = vadd.f32 0.0, %v573
      %v575 = vpop.f32.mrf.mxu0
      %v576 = vadd.f32 0.0, %v575
      %v577 = vpop.f32.mrf.mxu0
      %v578 = vadd.f32 0.0, %v577
      %579 = vmatprep.mubr.bf16.mxu0 0
      %580 = vmatmul.mubr.bf16.gmra.mxu0 %v503
      %v581 = vpop.f32.mrf.mxu0
      %v582 = vadd.f32 0.0, %v581
      %v583 = vpop.f32.mrf.mxu0
      %v584 = vadd.f32 0.0, %v583
      %v585 = vpop.f32.mrf.mxu0
      %v586 = vadd.f32 0.0, %v585
      %v587 = vpop.f32.mrf.mxu0
      %v588 = vadd.f32 0.0, %v587
      %589 = vmatprep.mubr.bf16.mxu0 0
      %590 = vmatmul.mubr.bf16.gmra.mxu0 %v506
      %v591 = vpop.f32.mrf.mxu0
      %v592 = vadd.f32 0.0, %v591
      %v593 = vpop.f32.mrf.mxu0
      %v594 = vadd.f32 0.0, %v593
      %v595 = vpop.f32.mrf.mxu0
      %v596 = vadd.f32 0.0, %v595
      %v597 = vpop.f32.mrf.mxu0
      %v598 = vadd.f32 0.0, %v597
      %599 = vmatprep.mubr.bf16.mxu0 0
      %600 = vmatmul.mubr.bf16.gmra.mxu0 %v509
      %v601 = vpop.f32.mrf.mxu0
      %v602 = vadd.f32 0.0, %v601
      %v603 = vpop.f32.mrf.mxu0
      %v604 = vadd.f32 0.0, %v603
      %v605 = vpop.f32.mrf.mxu0
      %v606 = vadd.f32 0.0, %v605
      %v607 = vpop.f32.mrf.mxu0
      %v608 = vadd.f32 0.0, %v607
      %609 = vmatprep.mubr.bf16.mxu0 0
      %610 = vmatmul.mubr.bf16.gmra.mxu0 %v512
      %v611 = vpop.f32.mrf.mxu0
      %v612 = vadd.f32 0.0, %v611
      %v613 = vpop.f32.mrf.mxu0
      %v614 = vadd.f32 0.0, %v613
      %v615 = vpop.f32.mrf.mxu0
      %v616 = vadd.f32 0.0, %v615
      %v617 = vpop.f32.mrf.mxu0
      %v618 = vadd.f32 0.0, %v617
      %619 = vmatprep.mubr.bf16.mxu0 0
      %620 = vmatmul.mubr.bf16.gmra.mxu0 %v515
      %v621 = vpop.f32.mrf.mxu0
      %v622 = vadd.f32 0.0, %v621
      %v623 = vpop.f32.mrf.mxu0
      %v624 = vadd.f32 0.0, %v623
      %v625 = vpop.f32.mrf.mxu0
      %v626 = vadd.f32 0.0, %v625
      %v627 = vpop.f32.mrf.mxu0
      %v628 = vadd.f32 0.0, %v627
      %629 = vdwg.mxu0
      %v630 = vlaneseq
      %v631 = vshrl.u32 %v630, 7
      %v632 = vsub.s32 0, %v631
      %v633 = vrot.slane %v399, %v632
      %v634 = vlaneseq
      %v635 = vshrl.u32 %v634, 7
      %v636 = vsub.s32 1, %v635
      %v637 = vrot.slane %v399, %v636
      %638 = vset.pattern.permute.xlu0 0
      %639 = vperm.xlu0 %638, %v416
      %v640 = vpop.permute.xlu0 %639
      %641 = vset.pattern.permute.xlu0 0
      %642 = vperm.xlu0 %641, %v417
      %v643 = vpop.permute.xlu0 %642
      %644 = vset.pattern.permute.xlu0 0
      %645 = vperm.xlu0 %644, %v418
      %v646 = vpop.permute.xlu0 %645
      %647 = vset.pattern.permute.xlu0 0
      %648 = vperm.xlu0 %647, %v419
      %v649 = vpop.permute.xlu0 %648
      %650 = vset.pattern.permute.xlu0 0
      %651 = vperm.xlu0 %650, %v420
      %v652 = vpop.permute.xlu0 %651
      %653 = vset.pattern.permute.xlu0 0
      %654 = vperm.xlu0 %653, %v421
      %v655 = vpop.permute.xlu0 %654
      %656 = vset.pattern.permute.xlu0 0
      %657 = vperm.xlu0 %656, %v422
      %v658 = vpop.permute.xlu0 %657
      %659 = vset.pattern.permute.xlu0 0
      %660 = vperm.xlu0 %659, %v423
      %v661 = vpop.permute.xlu0 %660
      %662 = vset.pattern.permute.xlu0 0
      %663 = vperm.xlu0 %662, %v424
      %v664 = vpop.permute.xlu0 %663
      %665 = vset.pattern.permute.xlu0 0
      %666 = vperm.xlu0 %665, %v425
      %v667 = vpop.permute.xlu0 %666
      %668 = vset.pattern.permute.xlu0 0
      %669 = vperm.xlu0 %668, %v426
      %v670 = vpop.permute.xlu0 %669
      %671 = vset.pattern.permute.xlu0 0
      %672 = vperm.xlu0 %671, %v427
      %v673 = vpop.permute.xlu0 %672
      %674 = vset.pattern.permute.xlu0 0
      %675 = vperm.xlu0 %674, %v428
      %v676 = vpop.permute.xlu0 %675
      %677 = vset.pattern.permute.xlu0 0
      %678 = vperm.xlu0 %677, %v429
      %v679 = vpop.permute.xlu0 %678
      %680 = vset.pattern.permute.xlu0 0
      %681 = vperm.xlu0 %680, %v430
      %v682 = vpop.permute.xlu0 %681
      %683 = vset.pattern.permute.xlu0 0
      %684 = vperm.xlu0 %683, %v431
      %v685 = vpop.permute.xlu0 %684
      %vm686 = vcmp.eq.s32.totalorder %v633, %v640
      %vm687 = vcmp.eq.s32.totalorder %v637, %v640
      %vm688 = vcmp.eq.s32.totalorder %v633, %v643
      %vm689 = vcmp.eq.s32.totalorder %v637, %v643
      %vm690 = vcmp.eq.s32.totalorder %v633, %v646
      %vm691 = vcmp.eq.s32.totalorder %v637, %v646
      %vm692 = vcmp.eq.s32.totalorder %v633, %v649
      %vm693 = vcmp.eq.s32.totalorder %v637, %v649
      %vm694 = vcmp.eq.s32.totalorder %v633, %v652
      %vm695 = vcmp.eq.s32.totalorder %v637, %v652
      %vm696 = vcmp.eq.s32.totalorder %v633, %v655
      %vm697 = vcmp.eq.s32.totalorder %v637, %v655
      %vm698 = vcmp.eq.s32.totalorder %v633, %v658
      %vm699 = vcmp.eq.s32.totalorder %v637, %v658
      %vm700 = vcmp.eq.s32.totalorder %v633, %v661
      %vm701 = vcmp.eq.s32.totalorder %v637, %v661
      %vm702 = vcmp.eq.s32.totalorder %v633, %v664
      %vm703 = vcmp.eq.s32.totalorder %v637, %v664
      %vm704 = vcmp.eq.s32.totalorder %v633, %v667
      %vm705 = vcmp.eq.s32.totalorder %v637, %v667
      %vm706 = vcmp.eq.s32.totalorder %v633, %v670
      %vm707 = vcmp.eq.s32.totalorder %v637, %v670
      %vm708 = vcmp.eq.s32.totalorder %v633, %v673
      %vm709 = vcmp.eq.s32.totalorder %v637, %v673
      %vm710 = vcmp.eq.s32.totalorder %v633, %v676
      %vm711 = vcmp.eq.s32.totalorder %v637, %v676
      %vm712 = vcmp.eq.s32.totalorder %v633, %v679
      %vm713 = vcmp.eq.s32.totalorder %v637, %v679
      %vm714 = vcmp.eq.s32.totalorder %v633, %v682
      %vm715 = vcmp.eq.s32.totalorder %v637, %v682
      %vm716 = vcmp.eq.s32.totalorder %v633, %v685
      %vm717 = vcmp.eq.s32.totalorder %v637, %v685
      %v718 = vsel %vm686, %v552, 0.0
      %v719 = vsel %vm687, %v554, 0.0
      %v720 = vsel %vm688, %v556, 0.0
      %v721 = vsel %vm689, %v558, 0.0
      %v722 = vsel %vm690, %v562, 0.0
      %v723 = vsel %vm691, %v564, 0.0
      %v724 = vsel %vm692, %v566, 0.0
      %v725 = vsel %vm693, %v568, 0.0
      %v726 = vsel %vm694, %v572, 0.0
      %v727 = vsel %vm695, %v574, 0.0
      %v728 = vsel %vm696, %v576, 0.0
      %v729 = vsel %vm697, %v578, 0.0
      %v730 = vsel %vm698, %v582, 0.0
      %v731 = vsel %vm699, %v584, 0.0
      %v732 = vsel %vm700, %v586, 0.0
      %v733 = vsel %vm701, %v588, 0.0
      %v734 = vsel %vm702, %v592, 0.0
      %v735 = vsel %vm703, %v594, 0.0
      %v736 = vsel %vm704, %v596, 0.0
      %v737 = vsel %vm705, %v598, 0.0
      %v738 = vsel %vm706, %v602, 0.0
      %v739 = vsel %vm707, %v604, 0.0
      %v740 = vsel %vm708, %v606, 0.0
      %v741 = vsel %vm709, %v608, 0.0
      %v742 = vsel %vm710, %v612, 0.0
      %v743 = vsel %vm711, %v614, 0.0
      %v744 = vsel %vm712, %v616, 0.0
      %v745 = vsel %vm713, %v618, 0.0
      %v746 = vsel %vm714, %v622, 0.0
      %v747 = vsel %vm715, %v624, 0.0
      %v748 = vsel %vm716, %v626, 0.0
      %v749 = vsel %vm717, %v628, 0.0
      %v750 = vunpack.c.l.bf16 %v400
      %v751 = vunpack.c.l.bf16 %v401
      %v752 = vunpack.c.l.bf16 %v402
      %v753 = vunpack.c.l.bf16 %v403
      %v754 = vunpack.c.l.bf16 %v404
      %v755 = vunpack.c.l.bf16 %v405
      %v756 = vunpack.c.l.bf16 %v406
      %v757 = vunpack.c.l.bf16 %v407
      %v758 = vunpack.c.l.bf16 %v408
      %v759 = vunpack.c.l.bf16 %v409
      %v760 = vunpack.c.l.bf16 %v410
      %v761 = vunpack.c.l.bf16 %v411
      %v762 = vunpack.c.l.bf16 %v412
      %v763 = vunpack.c.l.bf16 %v413
      %v764 = vunpack.c.l.bf16 %v414
      %v765 = vunpack.c.l.bf16 %v415
      %v766 = vpack.c.bf16 %v720, %v718
      %v767 = vpack.c.bf16 %v721, %v719
      %v768 = vpack.c.bf16 %v724, %v722
      %v769 = vpack.c.bf16 %v725, %v723
      %v770 = vpack.c.bf16 %v728, %v726
      %v771 = vpack.c.bf16 %v729, %v727
      %v772 = vpack.c.bf16 %v732, %v730
      %v773 = vpack.c.bf16 %v733, %v731
      %v774 = vpack.c.bf16 %v736, %v734
      %v775 = vpack.c.bf16 %v737, %v735
      %v776 = vpack.c.bf16 %v740, %v738
      %v777 = vpack.c.bf16 %v741, %v739
      %v778 = vpack.c.bf16 %v744, %v742
      %v779 = vpack.c.bf16 %v745, %v743
      %v780 = vpack.c.bf16 %v748, %v746
      %v781 = vpack.c.bf16 %v749, %v747
      %v810 = vunpack.c.l.b16 %v363
      %v811 = vunpack.c.l.b16 %v364
      %v812 = vunpack.c.l.b16 %v365
      %v813 = vunpack.c.l.b16 %v366
      %v814 = vunpack.c.l.b16 %v367
      %v815 = vunpack.c.l.b16 %v368
      %v816 = vunpack.c.l.b16 %v369
      %v817 = vunpack.c.l.b16 %v370
      %v818 = vunpack.c.l.b16 %v371
      %v819 = vunpack.c.l.b16 %v372
      %v820 = vunpack.c.l.b16 %v373
      %v821 = vunpack.c.l.b16 %v374
      %v822 = vunpack.c.l.b16 %v375
      %v823 = vunpack.c.l.b16 %v376
      %v824 = vunpack.c.l.b16 %v377
      %v825 = vunpack.c.l.b16 %v378
      %v826 = vunpack.c.l.b16 %v379
      %v827 = vunpack.c.l.b16 %v380
      %v828 = vunpack.c.l.b16 %v381
      %v829 = vunpack.c.l.b16 %v382
      %v830 = vunpack.c.l.b16 %v383
      %v831 = vunpack.c.l.b16 %v384
      %v832 = vunpack.c.l.b16 %v385
      %v833 = vunpack.c.l.b16 %v386
      %v834 = vunpack.c.l.b16 %v387
      %v835 = vunpack.c.l.b16 %v388
      %v836 = vunpack.c.l.b16 %v389
      %v837 = vunpack.c.l.b16 %v390
      %v838 = vpack.c.b16 %v811, %v810
      %v839 = vpack.c.b16 %v813, %v812
      %v840 = vpack.c.b16 %v815, %v814
      %v841 = vpack.c.b16 %v817, %v816
      %v842 = vpack.c.b16 %v819, %v818
      %v843 = vpack.c.b16 %v821, %v820
      %v844 = vpack.c.b16 %v823, %v822
      %v845 = vpack.c.b16 %v825, %v824
      %v846 = vpack.c.b16 %v827, %v826
      %v847 = vpack.c.b16 %v829, %v828
      %v848 = vpack.c.b16 %v831, %v830
      %v849 = vpack.c.b16 %v833, %v832
      %v850 = vpack.c.b16 %v835, %v834
      %v851 = vpack.c.b16 %v837, %v836
      %vm866 = vcmask 785408
      %v868 = vsel %vm866, %v767, 0
      %v871 = vsel %vm866, %v769, 0
      %v874 = vsel %vm866, %v771, 0
      %v877 = vsel %vm866, %v773, 0
      %v880 = vsel %vm866, %v775, 0
      %v883 = vsel %vm866, %v777, 0
      %v886 = vsel %vm866, %v779, 0
      %v889 = vsel %vm866, %v781, 0
      %891 = vmatprep.subr.bf16.mxu0 0
      %892 = vmatpush1.bf16.msra.mxu0 %v845
      %893 = vmatprep.subr.bf16.mxu0 0
      %894 = vmatpush1.bf16.msra.mxu0 %v844
      %895 = vmatprep.subr.bf16.mxu0 0
      %896 = vmatpush1.bf16.msra.mxu0 %v843
      %897 = vmatprep.subr.bf16.mxu0 0
      %898 = vmatpush1.bf16.msra.mxu0 %v842
      %899 = vmatprep.subr.bf16.mxu0 0
      %900 = vmatpush1.bf16.msra.mxu0 %v841
      %901 = vmatprep.subr.bf16.mxu0 0
      %902 = vmatpush1.bf16.msra.mxu0 %v840
      %903 = vmatprep.subr.bf16.mxu0 0
      %904 = vmatpush1.bf16.msra.mxu0 %v839
      %905 = vmatprep.subr.bf16.mxu0 0
      %906 = vmatpush1.bf16.msra.mxu0 %v838
      %907 = vmatprep.subr.bf16.mxu0 0
      %908 = vmatpush2.bf16.msra.mxu0 0
      %909 = vmatprep.subr.bf16.mxu0 0
      %910 = vmatpush2.bf16.msra.mxu0 0
      %911 = vmatprep.subr.bf16.mxu0 0
      %912 = vmatpush2.bf16.msra.mxu0 %v851
      %913 = vmatprep.subr.bf16.mxu0 0
      %914 = vmatpush2.bf16.msra.mxu0 %v850
      %915 = vmatprep.subr.bf16.mxu0 0
      %916 = vmatpush2.bf16.msra.mxu0 %v849
      %917 = vmatprep.subr.bf16.mxu0 0
      %918 = vmatpush2.bf16.msra.mxu0 %v848
      %919 = vmatprep.subr.bf16.mxu0 0
      %920 = vmatpush2.bf16.msra.mxu0 %v847
      %921 = vmatprep.subr.bf16.mxu0 0
      %922 = vmatpush2.bf16.msra.mxu0 %v846
      %923 = vmatprep.mubr.bf16.mxu0 %v868
      %924 = vmatmul.mubr.bf16.gmra.mxu0 %v766
      %v925 = vpop.f32.mrf.mxu0
      %v926 = vadd.f32 0.0, %v925
      %v927 = vpop.f32.mrf.mxu0
      %v928 = vpop.f32.mrf.mxu0
      %v929 = vadd.f32 0.0, %v928
      %v930 = vpop.f32.mrf.mxu0
      %931 = vmatprep.mubr.bf16.mxu0 %v871
      %932 = vmatmul.mubr.bf16.gmra.mxu0 %v768
      %v933 = vpop.f32.mrf.mxu0
      %v934 = vadd.f32 0.0, %v933
      %v935 = vpop.f32.mrf.mxu0
      %v936 = vpop.f32.mrf.mxu0
      %v937 = vadd.f32 0.0, %v936
      %v938 = vpop.f32.mrf.mxu0
      %939 = vmatprep.mubr.bf16.mxu0 %v874
      %940 = vmatmul.mubr.bf16.gmra.mxu0 %v770
      %v941 = vpop.f32.mrf.mxu0
      %v942 = vadd.f32 0.0, %v941
      %v943 = vpop.f32.mrf.mxu0
      %v944 = vpop.f32.mrf.mxu0
      %v945 = vadd.f32 0.0, %v944
      %v946 = vpop.f32.mrf.mxu0
      %947 = vmatprep.mubr.bf16.mxu0 %v877
      %948 = vmatmul.mubr.bf16.gmra.mxu0 %v772
      %v949 = vpop.f32.mrf.mxu0
      %v950 = vadd.f32 0.0, %v949
      %v951 = vpop.f32.mrf.mxu0
      %v952 = vpop.f32.mrf.mxu0
      %v953 = vadd.f32 0.0, %v952
      %v954 = vpop.f32.mrf.mxu0
      %955 = vmatprep.mubr.bf16.mxu0 %v880
      %956 = vmatmul.mubr.bf16.gmra.mxu0 %v774
      %v957 = vpop.f32.mrf.mxu0
      %v958 = vadd.f32 0.0, %v957
      %v959 = vpop.f32.mrf.mxu0
      %v960 = vpop.f32.mrf.mxu0
      %v961 = vadd.f32 0.0, %v960
      %v962 = vpop.f32.mrf.mxu0
      %963 = vmatprep.mubr.bf16.mxu0 %v883
      %964 = vmatmul.mubr.bf16.gmra.mxu0 %v776
      %v965 = vpop.f32.mrf.mxu0
      %v966 = vadd.f32 0.0, %v965
      %v967 = vpop.f32.mrf.mxu0
      %v968 = vpop.f32.mrf.mxu0
      %v969 = vadd.f32 0.0, %v968
      %v970 = vpop.f32.mrf.mxu0
      %971 = vmatprep.mubr.bf16.mxu0 %v886
      %972 = vmatmul.mubr.bf16.gmra.mxu0 %v778
      %v973 = vpop.f32.mrf.mxu0
      %v974 = vadd.f32 0.0, %v973
      %v975 = vpop.f32.mrf.mxu0
      %v976 = vpop.f32.mrf.mxu0
      %v977 = vadd.f32 0.0, %v976
      %v978 = vpop.f32.mrf.mxu0
      %979 = vmatprep.mubr.bf16.mxu0 %v889
      %980 = vmatmul.mubr.bf16.gmra.mxu0 %v780
      %v981 = vpop.f32.mrf.mxu0
      %v982 = vadd.f32 0.0, %v981
      %v983 = vpop.f32.mrf.mxu0
      %v984 = vpop.f32.mrf.mxu0
      %v985 = vadd.f32 0.0, %v984
      %v986 = vpop.f32.mrf.mxu0
      %987 = vdwg.mxu0
      %v988 = vadd.f32 %v750, %v926
      %v989 = vadd.f32 %v751, %v929
      %v990 = vadd.f32 %v752, %v934
      %v991 = vadd.f32 %v753, %v937
      %v992 = vadd.f32 %v754, %v942
      %v993 = vadd.f32 %v755, %v945
      %v994 = vadd.f32 %v756, %v950
      %v995 = vadd.f32 %v757, %v953
      %v996 = vadd.f32 %v758, %v958
      %v997 = vadd.f32 %v759, %v961
      %v998 = vadd.f32 %v760, %v966
      %v999 = vadd.f32 %v761, %v969
      %v1000 = vadd.f32 %v762, %v974
      %v1001 = vadd.f32 %v763, %v977
      %v1002 = vadd.f32 %v764, %v982
      %v1003 = vadd.f32 %v765, %v985
      %v1004 = vpack.c.bf16 %v989, %v988
      %v1005 = vpack.c.bf16 %v991, %v990
      %v1006 = vpack.c.bf16 %v993, %v992
      %v1007 = vpack.c.bf16 %v995, %v994
      %v1008 = vpack.c.bf16 %v997, %v996
      %v1009 = vpack.c.bf16 %v999, %v998
      %v1010 = vpack.c.bf16 %v1001, %v1000
      %v1011 = vpack.c.bf16 %v1003, %v1002
      %v1013 = vsel %vm492, %v1004, 0
      %v1016 = vsel %vm492, %v1005, 0
      %v1019 = vsel %vm492, %v1006, 0
      %v1022 = vsel %vm492, %v1007, 0
      %v1025 = vsel %vm492, %v1008, 0
      %v1028 = vsel %vm492, %v1009, 0
      %v1031 = vsel %vm492, %v1010, 0
      %v1034 = vsel %vm492, %v1011, 0
      %1036 = vmatprep.subr.bf16.mxu0 0
      %1037 = vmatpush1.bf16.msra.mxu0 0
      %1038 = vmatprep.subr.bf16.mxu0 0
      %1039 = vmatpush1.bf16.msra.mxu0 0
      %1040 = vmatprep.subr.bf16.mxu0 0
      %1041 = vmatpush1.bf16.msra.mxu0 0
      %1042 = vmatprep.subr.bf16.mxu0 0
      %1043 = vmatpush1.bf16.msra.mxu0 0
      %1044 = vmatprep.subr.bf16.mxu0 0
      %1045 = vmatpush1.bf16.msra.mxu0 0
      %1046 = vmatprep.subr.bf16.mxu0 0
      %1047 = vmatpush1.bf16.msra.mxu0 0
      %1048 = vmatprep.subr.bf16.mxu0 0
      %1049 = vmatpush1.bf16.msra.mxu0 %v396
      %1050 = vmatprep.subr.bf16.mxu0 0
      %1051 = vmatpush1.bf16.msra.mxu0 %v395
      %1052 = vmatprep.subr.bf16.mxu0 0
      %1053 = vmatpush2.bf16.msra.mxu0 0
      %1054 = vmatprep.subr.bf16.mxu0 0
      %1055 = vmatpush2.bf16.msra.mxu0 0
      %1056 = vmatprep.subr.bf16.mxu0 0
      %1057 = vmatpush2.bf16.msra.mxu0 0
      %1058 = vmatprep.subr.bf16.mxu0 0
      %1059 = vmatpush2.bf16.msra.mxu0 0
      %1060 = vmatprep.subr.bf16.mxu0 0
      %1061 = vmatpush2.bf16.msra.mxu0 0
      %1062 = vmatprep.subr.bf16.mxu0 0
      %1063 = vmatpush2.bf16.msra.mxu0 0
      %1064 = vmatprep.subr.bf16.mxu0 0
      %1065 = vmatpush2.bf16.msra.mxu0 0
      %1066 = vmatprep.subr.bf16.mxu0 0
      %1067 = vmatpush2.bf16.msra.mxu0 0
      %1068 = vmatprep.mubr.bf16.mxu0 0
      %1069 = vmatmul.mubr.bf16.gmra.mxu0 %v1013
      %v1070 = vpop.f32.mrf.mxu0
      %v1071 = vadd.f32 0.0, %v1070
      %v1072 = vpop.f32.mrf.mxu0
      %v1073 = vpop.f32.mrf.mxu0
      %v1074 = vadd.f32 0.0, %v1073
      %v1075 = vpop.f32.mrf.mxu0
      %1076 = vmatprep.mubr.bf16.mxu0 0
      %1077 = vmatmul.mubr.bf16.gmra.mxu0 %v1016
      %v1078 = vpop.f32.mrf.mxu0
      %v1079 = vadd.f32 0.0, %v1078
      %v1080 = vpop.f32.mrf.mxu0
      %v1081 = vpop.f32.mrf.mxu0
      %v1082 = vadd.f32 0.0, %v1081
      %v1083 = vpop.f32.mrf.mxu0
      %1084 = vmatprep.mubr.bf16.mxu0 0
      %1085 = vmatmul.mubr.bf16.gmra.mxu0 %v1019
      %v1086 = vpop.f32.mrf.mxu0
      %v1087 = vadd.f32 0.0, %v1086
      %v1088 = vpop.f32.mrf.mxu0
      %v1089 = vpop.f32.mrf.mxu0
      %v1090 = vadd.f32 0.0, %v1089
      %v1091 = vpop.f32.mrf.mxu0
      %1092 = vmatprep.mubr.bf16.mxu0 0
      %1093 = vmatmul.mubr.bf16.gmra.mxu0 %v1022
      %v1094 = vpop.f32.mrf.mxu0
      %v1095 = vadd.f32 0.0, %v1094
      %v1096 = vpop.f32.mrf.mxu0
      %v1097 = vpop.f32.mrf.mxu0
      %v1098 = vadd.f32 0.0, %v1097
      %v1099 = vpop.f32.mrf.mxu0
      %1100 = vmatprep.mubr.bf16.mxu0 0
      %1101 = vmatmul.mubr.bf16.gmra.mxu0 %v1025
      %v1102 = vpop.f32.mrf.mxu0
      %v1103 = vadd.f32 0.0, %v1102
      %v1104 = vpop.f32.mrf.mxu0
      %v1105 = vpop.f32.mrf.mxu0
      %v1106 = vadd.f32 0.0, %v1105
      %v1107 = vpop.f32.mrf.mxu0
      %1108 = vmatprep.mubr.bf16.mxu0 0
      %1109 = vmatmul.mubr.bf16.gmra.mxu0 %v1028
      %v1110 = vpop.f32.mrf.mxu0
      %v1111 = vadd.f32 0.0, %v1110
      %v1112 = vpop.f32.mrf.mxu0
      %v1113 = vpop.f32.mrf.mxu0
      %v1114 = vadd.f32 0.0, %v1113
      %v1115 = vpop.f32.mrf.mxu0
      %1116 = vmatprep.mubr.bf16.mxu0 0
      %1117 = vmatmul.mubr.bf16.gmra.mxu0 %v1031
      %v1118 = vpop.f32.mrf.mxu0
      %v1119 = vadd.f32 0.0, %v1118
      %v1120 = vpop.f32.mrf.mxu0
      %v1121 = vpop.f32.mrf.mxu0
      %v1122 = vadd.f32 0.0, %v1121
      %v1123 = vpop.f32.mrf.mxu0
      %1124 = vmatprep.mubr.bf16.mxu0 0
      %1125 = vmatmul.mubr.bf16.gmra.mxu0 %v1034
      %v1126 = vpop.f32.mrf.mxu0
      %v1127 = vadd.f32 0.0, %v1126
      %v1128 = vpop.f32.mrf.mxu0
      %v1129 = vpop.f32.mrf.mxu0
      %v1130 = vadd.f32 0.0, %v1129
      %v1131 = vpop.f32.mrf.mxu0
      %1132 = vdwg.mxu0
      %v1134 = vsel %vm492, %v398, 0
      %1136 = vmatprep.subr.bf16.mxu0 0
      %1137 = vmatpush1.bf16.xpose.msra.mxu0 %v1034
      %1138 = vmatprep.subr.bf16.mxu0 0
      %1139 = vmatpush1.bf16.xpose.msra.mxu0 %v1031
      %1140 = vmatprep.subr.bf16.mxu0 0
      %1141 = vmatpush1.bf16.xpose.msra.mxu0 %v1028
      %1142 = vmatprep.subr.bf16.mxu0 0
      %1143 = vmatpush1.bf16.xpose.msra.mxu0 %v1025
      %1144 = vmatprep.subr.bf16.mxu0 0
      %1145 = vmatpush1.bf16.xpose.msra.mxu0 %v1022
      %1146 = vmatprep.subr.bf16.mxu0 0
      %1147 = vmatpush1.bf16.xpose.msra.mxu0 %v1019
      %1148 = vmatprep.subr.bf16.mxu0 0
      %1149 = vmatpush1.bf16.xpose.msra.mxu0 %v1016
      %1150 = vmatprep.subr.bf16.mxu0 0
      %1151 = vmatpush1.bf16.xpose.msra.mxu0 %v1013
      %1152 = vmatprep.subr.bf16.mxu0 0
      %1153 = vmatpush2.bf16.xpose.msra.mxu0 0
      %1154 = vmatprep.subr.bf16.mxu0 0
      %1155 = vmatpush2.bf16.xpose.msra.mxu0 0
      %1156 = vmatprep.subr.bf16.mxu0 0
      %1157 = vmatpush2.bf16.xpose.msra.mxu0 0
      %1158 = vmatprep.subr.bf16.mxu0 0
      %1159 = vmatpush2.bf16.xpose.msra.mxu0 0
      %1160 = vmatprep.subr.bf16.mxu0 0
      %1161 = vmatpush2.bf16.xpose.msra.mxu0 0
      %1162 = vmatprep.subr.bf16.mxu0 0
      %1163 = vmatpush2.bf16.xpose.msra.mxu0 0
      %1164 = vmatprep.subr.bf16.mxu0 0
      %1165 = vmatpush2.bf16.xpose.msra.mxu0 0
      %1166 = vmatprep.subr.bf16.mxu0 0
      %1167 = vmatpush2.bf16.xpose.msra.mxu0 0
      %1168 = vmatprep.mubr.bf16.mxu0 0
      %1169 = vmatmul.mubr.bf16.gmra.mxu0 %v1134
      %v1170 = vpop.f32.mrf.mxu0
      %v1171 = vadd.f32 0.0, %v1170
      %v1172 = vpop.f32.mrf.mxu0
      %v1173 = vpop.f32.mrf.mxu0
      %v1174 = vpop.f32.mrf.mxu0
      %1175 = vdwg.mxu0
      %1177 = vset.pattern.permute.xlu0 0
      %1178 = vperm.xlu0 %1177, %v1071
      %v1179 = vpop.permute.xlu0 %1178
      %1182 = vset.pattern.permute.xlu0 0
      %1183 = vperm.xlu0 %1182, %v1074
      %v1184 = vpop.permute.xlu0 %1183
      %1187 = vset.pattern.permute.xlu0 0
      %1188 = vperm.xlu0 %1187, %v1079
      %v1189 = vpop.permute.xlu0 %1188
      %1192 = vset.pattern.permute.xlu0 0
      %1193 = vperm.xlu0 %1192, %v1082
      %v1194 = vpop.permute.xlu0 %1193
      %1197 = vset.pattern.permute.xlu0 0
      %1198 = vperm.xlu0 %1197, %v1087
      %v1199 = vpop.permute.xlu0 %1198
      %1202 = vset.pattern.permute.xlu0 0
      %1203 = vperm.xlu0 %1202, %v1090
      %v1204 = vpop.permute.xlu0 %1203
      %1207 = vset.pattern.permute.xlu0 0
      %1208 = vperm.xlu0 %1207, %v1095
      %v1209 = vpop.permute.xlu0 %1208
      %1212 = vset.pattern.permute.xlu0 0
      %1213 = vperm.xlu0 %1212, %v1098
      %v1214 = vpop.permute.xlu0 %1213
      %1217 = vset.pattern.permute.xlu0 0
      %1218 = vperm.xlu0 %1217, %v1103
      %v1219 = vpop.permute.xlu0 %1218
      %1222 = vset.pattern.permute.xlu0 0
      %1223 = vperm.xlu0 %1222, %v1106
      %v1224 = vpop.permute.xlu0 %1223
      %1227 = vset.pattern.permute.xlu0 0
      %1228 = vperm.xlu0 %1227, %v1111
      %v1229 = vpop.permute.xlu0 %1228
      %1232 = vset.pattern.permute.xlu0 0
      %1233 = vperm.xlu0 %1232, %v1114
      %v1234 = vpop.permute.xlu0 %1233
      %1237 = vset.pattern.permute.xlu0 0
      %1238 = vperm.xlu0 %1237, %v1119
      %v1239 = vpop.permute.xlu0 %1238
      %1242 = vset.pattern.permute.xlu0 0
      %1243 = vperm.xlu0 %1242, %v1122
      %v1244 = vpop.permute.xlu0 %1243
      %1247 = vset.pattern.permute.xlu0 0
      %1248 = vperm.xlu0 %1247, %v1127
      %v1249 = vpop.permute.xlu0 %1248
      %1252 = vset.pattern.permute.xlu0 0
      %1253 = vperm.xlu0 %1252, %v1130
      %v1254 = vpop.permute.xlu0 %1253
      %v1256 = vlaneseq
      %v1257 = vshrl.u32 %v1256, 7
      %v1258 = vsub.s32 0, %v1257
      %v1259 = vrot.slane %v1171, %v1258
      %v1260 = vadd.f32 %v1179, %v1259
      %v1261 = vadd.f32 %v1184, %v1259
      %v1262 = vadd.f32 %v1189, %v1259
      %v1263 = vadd.f32 %v1194, %v1259
      %v1264 = vadd.f32 %v1199, %v1259
      %v1265 = vadd.f32 %v1204, %v1259
      %v1266 = vadd.f32 %v1209, %v1259
      %v1267 = vadd.f32 %v1214, %v1259
      %v1268 = vadd.f32 %v1219, %v1259
      %v1269 = vadd.f32 %v1224, %v1259
      %v1270 = vadd.f32 %v1229, %v1259
      %v1271 = vadd.f32 %v1234, %v1259
      %v1272 = vadd.f32 %v1239, %v1259
      %v1273 = vadd.f32 %v1244, %v1259
      %v1274 = vadd.f32 %v1249, %v1259
      %v1275 = vadd.f32 %v1254, %v1259
      %v1276 = vmul.f32 %v1260, 0.2
      %v1277 = vmul.f32 %v1261, 0.2
      %v1278 = vmul.f32 %v1262, 0.2
      %v1279 = vmul.f32 %v1263, 0.2
      %v1280 = vmul.f32 %v1264, 0.2
      %v1281 = vmul.f32 %v1265, 0.2
      %v1282 = vmul.f32 %v1266, 0.2
      %v1283 = vmul.f32 %v1267, 0.2
      %v1284 = vmul.f32 %v1268, 0.2
      %v1285 = vmul.f32 %v1269, 0.2
      %v1286 = vmul.f32 %v1270, 0.2
      %v1287 = vmul.f32 %v1271, 0.2
      %v1288 = vmul.f32 %v1272, 0.2
      %v1289 = vmul.f32 %v1273, 0.2
      %v1290 = vmul.f32 %v1274, 0.2
      %v1291 = vmul.f32 %v1275, 0.2
      %v1292 = vmax.f32 %v1260, %v1276
      %v1293 = vmax.f32 %v1261, %v1277
      %v1294 = vmax.f32 %v1262, %v1278
      %v1295 = vmax.f32 %v1263, %v1279
      %v1296 = vmax.f32 %v1264, %v1280
      %v1297 = vmax.f32 %v1265, %v1281
      %v1298 = vmax.f32 %v1266, %v1282
      %v1299 = vmax.f32 %v1267, %v1283
      %v1300 = vmax.f32 %v1268, %v1284
      %v1301 = vmax.f32 %v1269, %v1285
      %v1302 = vmax.f32 %v1270, %v1286
      %v1303 = vmax.f32 %v1271, %v1287
      %v1304 = vmax.f32 %v1272, %v1288
      %v1305 = vmax.f32 %v1273, %v1289
      %v1306 = vmax.f32 %v1274, %v1290
      %v1307 = vmax.f32 %v1275, %v1291
      %v1308 = vld [vmem:[%s348] sm:$0xff]
      %v1309 = vld [vmem:[%s348 + $0x8] sm:$0xff]
      %v1310 = vld [vmem:[%s348 + $0x10] sm:$0xff]
      %v1311 = vld [vmem:[%s348 + $0x18] sm:$0xff]
      %vm1312 = vnez %v1308
      %vm1313 = vnez %v1309
      %vm1314 = vnez %v1310
      %vm1315 = vnez %v1311
      %v1316 = vsel %vm1312, 16843009, 0
      %v1317 = vsel %vm1313, 16843009, 0
      %v1318 = vsel %vm1314, 16843009, 0
      %v1319 = vsel %vm1315, 16843009, 0
      %v1320 = vunpack.c.0.s8 %v1316
      %v1321 = vunpack.c.1.s8 %v1316
      %v1322 = vunpack.c.2.s8 %v1316
      %v1323 = vunpack.c.3.s8 %v1316
      %v1324 = vunpack.c.0.s8 %v1317
      %v1325 = vunpack.c.1.s8 %v1317
      %v1326 = vunpack.c.2.s8 %v1317
      %v1327 = vunpack.c.3.s8 %v1317
      %v1328 = vunpack.c.0.s8 %v1318
      %v1329 = vunpack.c.1.s8 %v1318
      %v1330 = vunpack.c.2.s8 %v1318
      %v1331 = vunpack.c.3.s8 %v1318
      %v1332 = vunpack.c.0.s8 %v1319
      %v1333 = vunpack.c.1.s8 %v1319
      %v1334 = vunpack.c.2.s8 %v1319
      %v1335 = vunpack.c.3.s8 %v1319
      %v1336 = vpack.c.b16 %v1320, %v1320
      %v1337 = vpack.c.b8 %v1336, %v1336
      %v1338 = vpack.c.b16 %v1321, %v1321
      %v1339 = vpack.c.b8 %v1338, %v1338
      %v1340 = vpack.c.b16 %v1322, %v1322
      %v1341 = vpack.c.b8 %v1340, %v1340
      %v1342 = vpack.c.b16 %v1323, %v1323
      %v1343 = vpack.c.b8 %v1342, %v1342
      %v1344 = vpack.c.b16 %v1324, %v1324
      %v1345 = vpack.c.b8 %v1344, %v1344
      %v1346 = vpack.c.b16 %v1325, %v1325
      %v1347 = vpack.c.b8 %v1346, %v1346
      %v1348 = vpack.c.b16 %v1326, %v1326
      %v1349 = vpack.c.b8 %v1348, %v1348
      %v1350 = vpack.c.b16 %v1327, %v1327
      %v1351 = vpack.c.b8 %v1350, %v1350
      %v1352 = vpack.c.b16 %v1328, %v1328
      %v1353 = vpack.c.b8 %v1352, %v1352
      %v1354 = vpack.c.b16 %v1329, %v1329
      %v1355 = vpack.c.b8 %v1354, %v1354
      %v1356 = vpack.c.b16 %v1330, %v1330
      %v1357 = vpack.c.b8 %v1356, %v1356
      %v1358 = vpack.c.b16 %v1331, %v1331
      %v1359 = vpack.c.b8 %v1358, %v1358
      %v1360 = vpack.c.b16 %v1332, %v1332
      %v1361 = vpack.c.b8 %v1360, %v1360
      %v1362 = vpack.c.b16 %v1333, %v1333
      %v1363 = vpack.c.b8 %v1362, %v1362
      %v1364 = vpack.c.b16 %v1334, %v1334
      %v1365 = vpack.c.b8 %v1364, %v1364
      %v1366 = vpack.c.b16 %v1335, %v1335
      %v1367 = vpack.c.b8 %v1366, %v1366
      %vm1368 = vnez %v1337
      %vm1369 = vnez %v1339
      %vm1370 = vnez %v1341
      %vm1371 = vnez %v1343
      %vm1372 = vnez %v1345
      %vm1373 = vnez %v1347
      %vm1374 = vnez %v1349
      %vm1375 = vnez %v1351
      %vm1376 = vnez %v1353
      %vm1377 = vnez %v1355
      %vm1378 = vnez %v1357
      %vm1379 = vnez %v1359
      %vm1380 = vnez %v1361
      %vm1381 = vnez %v1363
      %vm1382 = vnez %v1365
      %vm1383 = vnez %v1367
      %v1384 = vsel %vm1368, 16843009, 0
      %v1385 = vsel %vm1369, 16843009, 0
      %v1386 = vsel %vm1370, 16843009, 0
      %v1387 = vsel %vm1371, 16843009, 0
      %v1388 = vsel %vm1372, 16843009, 0
      %v1389 = vsel %vm1373, 16843009, 0
      %v1390 = vsel %vm1374, 16843009, 0
      %v1391 = vsel %vm1375, 16843009, 0
      %v1392 = vsel %vm1376, 16843009, 0
      %v1393 = vsel %vm1377, 16843009, 0
      %v1394 = vsel %vm1378, 16843009, 0
      %v1395 = vsel %vm1379, 16843009, 0
      %v1396 = vsel %vm1380, 16843009, 0
      %v1397 = vsel %vm1381, 16843009, 0
      %v1398 = vsel %vm1382, 16843009, 0
      %v1399 = vsel %vm1383, 16843009, 0
      %v1400 = vunpack.c.0.s8 %v1384
      %v1401 = vunpack.c.0.s8 %v1385
      %v1402 = vunpack.c.0.s8 %v1386
      %v1403 = vunpack.c.0.s8 %v1387
      %v1404 = vunpack.c.0.s8 %v1388
      %v1405 = vunpack.c.0.s8 %v1389
      %v1406 = vunpack.c.0.s8 %v1390
      %v1407 = vunpack.c.0.s8 %v1391
      %v1408 = vunpack.c.0.s8 %v1392
      %v1409 = vunpack.c.0.s8 %v1393
      %v1410 = vunpack.c.0.s8 %v1394
      %v1411 = vunpack.c.0.s8 %v1395
      %v1412 = vunpack.c.0.s8 %v1396
      %v1413 = vunpack.c.0.s8 %v1397
      %v1414 = vunpack.c.0.s8 %v1398
      %v1415 = vunpack.c.0.s8 %v1399
      %vm1416 = vcmp.ne.s32.totalorder %v1400, 0
      %vm1417 = vcmp.ne.s32.totalorder %v1401, 0
      %vm1418 = vcmp.ne.s32.totalorder %v1402, 0
      %vm1419 = vcmp.ne.s32.totalorder %v1403, 0
      %vm1420 = vcmp.ne.s32.totalorder %v1404, 0
      %vm1421 = vcmp.ne.s32.totalorder %v1405, 0
      %vm1422 = vcmp.ne.s32.totalorder %v1406, 0
      %vm1423 = vcmp.ne.s32.totalorder %v1407, 0
      %vm1424 = vcmp.ne.s32.totalorder %v1408, 0
      %vm1425 = vcmp.ne.s32.totalorder %v1409, 0
      %vm1426 = vcmp.ne.s32.totalorder %v1410, 0
      %vm1427 = vcmp.ne.s32.totalorder %v1411, 0
      %vm1428 = vcmp.ne.s32.totalorder %v1412, 0
      %vm1429 = vcmp.ne.s32.totalorder %v1413, 0
      %vm1430 = vcmp.ne.s32.totalorder %v1414, 0
      %vm1431 = vcmp.ne.s32.totalorder %v1415, 0
      %v1432 = vsel %vm1416, %v1292, -1e+30
      %v1433 = vsel %vm1417, %v1293, -1e+30
      %v1434 = vsel %vm1418, %v1294, -1e+30
      %v1435 = vsel %vm1419, %v1295, -1e+30
      %v1436 = vsel %vm1420, %v1296, -1e+30
      %v1437 = vsel %vm1421, %v1297, -1e+30
      %v1438 = vsel %vm1422, %v1298, -1e+30
      %v1439 = vsel %vm1423, %v1299, -1e+30
      %v1440 = vsel %vm1424, %v1300, -1e+30
      %v1441 = vsel %vm1425, %v1301, -1e+30
      %v1442 = vsel %vm1426, %v1302, -1e+30
      %v1443 = vsel %vm1427, %v1303, -1e+30
      %v1444 = vsel %vm1428, %v1304, -1e+30
      %v1445 = vsel %vm1429, %v1305, -1e+30
      %v1446 = vsel %vm1430, %v1306, -1e+30
      %v1447 = vsel %vm1431, %v1307, -1e+30
      %1448 = vmax.xlane.f32.xlu0 %v1432
      %v1449 = vpop.xlane.xlu0 %1448
      %1450 = vmax.xlane.f32.xlu0 %v1433
      %v1451 = vpop.xlane.xlu0 %1450
      %1452 = vmax.xlane.f32.xlu0 %v1434
      %v1453 = vpop.xlane.xlu0 %1452
      %1454 = vmax.xlane.f32.xlu0 %v1435
      %v1455 = vpop.xlane.xlu0 %1454
      %1456 = vmax.xlane.f32.xlu0 %v1436
      %v1457 = vpop.xlane.xlu0 %1456
      %1458 = vmax.xlane.f32.xlu0 %v1437
      %v1459 = vpop.xlane.xlu0 %1458
      %1460 = vmax.xlane.f32.xlu0 %v1438
      %v1461 = vpop.xlane.xlu0 %1460
      %1462 = vmax.xlane.f32.xlu0 %v1439
      %v1463 = vpop.xlane.xlu0 %1462
      %1464 = vmax.xlane.f32.xlu0 %v1440
      %v1465 = vpop.xlane.xlu0 %1464
      %1466 = vmax.xlane.f32.xlu0 %v1441
      %v1467 = vpop.xlane.xlu0 %1466
      %1468 = vmax.xlane.f32.xlu0 %v1442
      %v1469 = vpop.xlane.xlu0 %1468
      %1470 = vmax.xlane.f32.xlu0 %v1443
      %v1471 = vpop.xlane.xlu0 %1470
      %1472 = vmax.xlane.f32.xlu0 %v1444
      %v1473 = vpop.xlane.xlu0 %1472
      %1474 = vmax.xlane.f32.xlu0 %v1445
      %v1475 = vpop.xlane.xlu0 %1474
      %1476 = vmax.xlane.f32.xlu0 %v1446
      %v1477 = vpop.xlane.xlu0 %1476
      %1478 = vmax.xlane.f32.xlu0 %v1447
      %v1479 = vpop.xlane.xlu0 %1478
      %v1480 = vsub.f32 %v1432, %v1449
      %v1481 = vsub.f32 %v1433, %v1451
      %v1482 = vsub.f32 %v1434, %v1453
      %v1483 = vsub.f32 %v1435, %v1455
      %v1484 = vsub.f32 %v1436, %v1457
      %v1485 = vsub.f32 %v1437, %v1459
      %v1486 = vsub.f32 %v1438, %v1461
      %v1487 = vsub.f32 %v1439, %v1463
      %v1488 = vsub.f32 %v1440, %v1465
      %v1489 = vsub.f32 %v1441, %v1467
      %v1490 = vsub.f32 %v1442, %v1469
      %v1491 = vsub.f32 %v1443, %v1471
      %v1492 = vsub.f32 %v1444, %v1473
      %v1493 = vsub.f32 %v1445, %v1475
      %v1494 = vsub.f32 %v1446, %v1477
      %v1495 = vsub.f32 %v1447, %v1479
      %v1496 = vmul.f32 %v1480, 1.442695
      %v1497 = vpow.pop %v1496
      %v1498 = vmul.f32 %v1481, 1.442695
      %v1499 = vpow.pop %v1498
      %v1500 = vmul.f32 %v1482, 1.442695
      %v1501 = vpow.pop %v1500
      %v1502 = vmul.f32 %v1483, 1.442695
      %v1503 = vpow.pop %v1502
      %v1504 = vmul.f32 %v1484, 1.442695
      %v1505 = vpow.pop %v1504
      %v1506 = vmul.f32 %v1485, 1.442695
      %v1507 = vpow.pop %v1506
      %v1508 = vmul.f32 %v1486, 1.442695
      %v1509 = vpow.pop %v1508
      %v1510 = vmul.f32 %v1487, 1.442695
      %v1511 = vpow.pop %v1510
      %v1512 = vmul.f32 %v1488, 1.442695
      %v1513 = vpow.pop %v1512
      %v1514 = vmul.f32 %v1489, 1.442695
      %v1515 = vpow.pop %v1514
      %v1516 = vmul.f32 %v1490, 1.442695
      %v1517 = vpow.pop %v1516
      %v1518 = vmul.f32 %v1491, 1.442695
      %v1519 = vpow.pop %v1518
      %v1520 = vmul.f32 %v1492, 1.442695
      %v1521 = vpow.pop %v1520
      %v1522 = vmul.f32 %v1493, 1.442695
      %v1523 = vpow.pop %v1522
      %v1524 = vmul.f32 %v1494, 1.442695
      %v1525 = vpow.pop %v1524
      %v1526 = vmul.f32 %v1495, 1.442695
      %v1527 = vpow.pop %v1526
      %1528 = vadd.xlane.f32.xlu0 %v1497
      %v1529 = vpop.xlane.xlu0 %1528
      %1530 = vadd.xlane.f32.xlu0 %v1499
      %v1531 = vpop.xlane.xlu0 %1530
      %1532 = vadd.xlane.f32.xlu0 %v1501
      %v1533 = vpop.xlane.xlu0 %1532
      %1534 = vadd.xlane.f32.xlu0 %v1503
      %v1535 = vpop.xlane.xlu0 %1534
      %1536 = vadd.xlane.f32.xlu0 %v1505
      %v1537 = vpop.xlane.xlu0 %1536
      %1538 = vadd.xlane.f32.xlu0 %v1507
      %v1539 = vpop.xlane.xlu0 %1538
      %1540 = vadd.xlane.f32.xlu0 %v1509
      %v1541 = vpop.xlane.xlu0 %1540
      %1542 = vadd.xlane.f32.xlu0 %v1511
      %v1543 = vpop.xlane.xlu0 %1542
      %1544 = vadd.xlane.f32.xlu0 %v1513
      %v1545 = vpop.xlane.xlu0 %1544
      %1546 = vadd.xlane.f32.xlu0 %v1515
      %v1547 = vpop.xlane.xlu0 %1546
      %1548 = vadd.xlane.f32.xlu0 %v1517
      %v1549 = vpop.xlane.xlu0 %1548
      %1550 = vadd.xlane.f32.xlu0 %v1519
      %v1551 = vpop.xlane.xlu0 %1550
      %1552 = vadd.xlane.f32.xlu0 %v1521
      %v1553 = vpop.xlane.xlu0 %1552
      %1554 = vadd.xlane.f32.xlu0 %v1523
      %v1555 = vpop.xlane.xlu0 %1554
      %1556 = vadd.xlane.f32.xlu0 %v1525
      %v1557 = vpop.xlane.xlu0 %1556
      %1558 = vadd.xlane.f32.xlu0 %v1527
      %v1559 = vpop.xlane.xlu0 %1558
      %v1560 = vrcp.pop %v1529
      %v1561 = vrcp.pop %v1531
      %v1562 = vrcp.pop %v1533
      %v1563 = vrcp.pop %v1535
      %v1564 = vrcp.pop %v1537
      %v1565 = vrcp.pop %v1539
      %v1566 = vrcp.pop %v1541
      %v1567 = vrcp.pop %v1543
      %v1568 = vrcp.pop %v1545
      %v1569 = vrcp.pop %v1547
      %v1570 = vrcp.pop %v1549
      %v1571 = vrcp.pop %v1551
      %v1572 = vrcp.pop %v1553
      %v1573 = vrcp.pop %v1555
      %v1574 = vrcp.pop %v1557
      %v1575 = vrcp.pop %v1559
      %v1576 = vmul.f32 %v1497, %v1560
      %v1577 = vmul.f32 %v1499, %v1561
      %v1578 = vmul.f32 %v1501, %v1562
      %v1579 = vmul.f32 %v1503, %v1563
      %v1580 = vmul.f32 %v1505, %v1564
      %v1581 = vmul.f32 %v1507, %v1565
      %v1582 = vmul.f32 %v1509, %v1566
      %v1583 = vmul.f32 %v1511, %v1567
      %v1584 = vmul.f32 %v1513, %v1568
      %v1585 = vmul.f32 %v1515, %v1569
      %v1586 = vmul.f32 %v1517, %v1570
      %v1587 = vmul.f32 %v1519, %v1571
      %v1588 = vmul.f32 %v1521, %v1572
      %v1589 = vmul.f32 %v1523, %v1573
      %v1590 = vmul.f32 %v1525, %v1574
      %v1591 = vmul.f32 %v1527, %v1575
      %v1592 = vpack.c.bf16 %v1577, %v1576
      %v1593 = vpack.c.bf16 %v1579, %v1578
      %v1594 = vpack.c.bf16 %v1581, %v1580
      %v1595 = vpack.c.bf16 %v1583, %v1582
      %v1596 = vpack.c.bf16 %v1585, %v1584
      %v1597 = vpack.c.bf16 %v1587, %v1586
      %v1598 = vpack.c.bf16 %v1589, %v1588
      %v1599 = vpack.c.bf16 %v1591, %v1590
      %1600 = vmatprep.subr.bf16.mxu0 0
      %1601 = vmatpush1.bf16.msra.mxu0 %v1011
      %1602 = vmatprep.subr.bf16.mxu0 0
      %1603 = vmatpush1.bf16.msra.mxu0 %v1010
      %1604 = vmatprep.subr.bf16.mxu0 0
      %1605 = vmatpush1.bf16.msra.mxu0 %v1009
      %1606 = vmatprep.subr.bf16.mxu0 0
      %1607 = vmatpush1.bf16.msra.mxu0 %v1008
      %1608 = vmatprep.subr.bf16.mxu0 0
      %1609 = vmatpush1.bf16.msra.mxu0 %v1007
      %1610 = vmatprep.subr.bf16.mxu0 0
      %1611 = vmatpush1.bf16.msra.mxu0 %v1006
      %1612 = vmatprep.subr.bf16.mxu0 0
      %1613 = vmatpush1.bf16.msra.mxu0 %v1005
      %1614 = vmatprep.subr.bf16.mxu0 0
      %1615 = vmatpush1.bf16.msra.mxu0 %v1004
      %1616 = vmatprep.subr.bf16.mxu0 0
      %1617 = vmatpush2.bf16.msra.mxu0 0
      %1618 = vmatprep.subr.bf16.mxu0 0
      %1619 = vmatpush2.bf16.msra.mxu0 0
      %1620 = vmatprep.subr.bf16.mxu0 0
      %1621 = vmatpush2.bf16.msra.mxu0 0
      %1622 = vmatprep.subr.bf16.mxu0 0
      %1623 = vmatpush2.bf16.msra.mxu0 0
      %1624 = vmatprep.subr.bf16.mxu0 0
      %1625 = vmatpush2.bf16.msra.mxu0 0
      %1626 = vmatprep.subr.bf16.mxu0 0
      %1627 = vmatpush2.bf16.msra.mxu0 0
      %1628 = vmatprep.subr.bf16.mxu0 0
      %1629 = vmatpush2.bf16.msra.mxu0 0
      %1630 = vmatprep.subr.bf16.mxu0 0
      %1631 = vmatpush2.bf16.msra.mxu0 0
      %1632 = vmatprep.mubr.bf16.mxu0 0
      %1633 = vmatmul.mubr.bf16.gmra.mxu0 %v1592
      %v1634 = vpop.f32.mrf.mxu0
      %v1635 = vadd.f32 0.0, %v1634
      %v1636 = vpop.f32.mrf.mxu0
      %v1637 = vpop.f32.mrf.mxu0
      %v1638 = vadd.f32 0.0, %v1637
      %v1639 = vpop.f32.mrf.mxu0
      %1640 = vmatprep.mubr.bf16.mxu0 0
      %1641 = vmatmul.mubr.bf16.gmra.mxu0 %v1593
      %v1642 = vpop.f32.mrf.mxu0
      %v1643 = vadd.f32 0.0, %v1642
      %v1644 = vpop.f32.mrf.mxu0
      %v1645 = vpop.f32.mrf.mxu0
      %v1646 = vadd.f32 0.0, %v1645
      %v1647 = vpop.f32.mrf.mxu0
      %1648 = vmatprep.mubr.bf16.mxu0 0
      %1649 = vmatmul.mubr.bf16.gmra.mxu0 %v1594
      %v1650 = vpop.f32.mrf.mxu0
      %v1651 = vadd.f32 0.0, %v1650
      %v1652 = vpop.f32.mrf.mxu0
      %v1653 = vpop.f32.mrf.mxu0
      %v1654 = vadd.f32 0.0, %v1653
      %v1655 = vpop.f32.mrf.mxu0
      %1656 = vmatprep.mubr.bf16.mxu0 0
      %1657 = vmatmul.mubr.bf16.gmra.mxu0 %v1595
      %v1658 = vpop.f32.mrf.mxu0
      %v1659 = vadd.f32 0.0, %v1658
      %v1660 = vpop.f32.mrf.mxu0
      %v1661 = vpop.f32.mrf.mxu0
      %v1662 = vadd.f32 0.0, %v1661
      %v1663 = vpop.f32.mrf.mxu0
      %1664 = vmatprep.mubr.bf16.mxu0 0
      %1665 = vmatmul.mubr.bf16.gmra.mxu0 %v1596
      %v1666 = vpop.f32.mrf.mxu0
      %v1667 = vadd.f32 0.0, %v1666
      %v1668 = vpop.f32.mrf.mxu0
      %v1669 = vpop.f32.mrf.mxu0
      %v1670 = vadd.f32 0.0, %v1669
      %v1671 = vpop.f32.mrf.mxu0
      %1672 = vmatprep.mubr.bf16.mxu0 0
      %1673 = vmatmul.mubr.bf16.gmra.mxu0 %v1597
      %v1674 = vpop.f32.mrf.mxu0
      %v1675 = vadd.f32 0.0, %v1674
      %v1676 = vpop.f32.mrf.mxu0
      %v1677 = vpop.f32.mrf.mxu0
      %v1678 = vadd.f32 0.0, %v1677
      %v1679 = vpop.f32.mrf.mxu0
      %1680 = vmatprep.mubr.bf16.mxu0 0
      %1681 = vmatmul.mubr.bf16.gmra.mxu0 %v1598
      %v1682 = vpop.f32.mrf.mxu0
      %v1683 = vadd.f32 0.0, %v1682
      %v1684 = vpop.f32.mrf.mxu0
      %v1685 = vpop.f32.mrf.mxu0
      %v1686 = vadd.f32 0.0, %v1685
      %v1687 = vpop.f32.mrf.mxu0
      %1688 = vmatprep.mubr.bf16.mxu0 0
      %1689 = vmatmul.mubr.bf16.gmra.mxu0 %v1599
      %v1690 = vpop.f32.mrf.mxu0
      %v1691 = vadd.f32 0.0, %v1690
      %v1692 = vpop.f32.mrf.mxu0
      %v1693 = vpop.f32.mrf.mxu0
      %v1694 = vadd.f32 0.0, %v1693
      %v1695 = vpop.f32.mrf.mxu0
      %1696 = vdwg.mxu0
      %1697 = vst.msk [vmem:[%s354] sm:$0xff] %vm492, %v1635
      %1698 = vst.msk [vmem:[%s354 + $0x8] sm:$0xff] %vm492, %v1638
      %1699 = vst.msk [vmem:[%s354 + $0x10] sm:$0xff] %vm492, %v1643
      %1700 = vst.msk [vmem:[%s354 + $0x18] sm:$0xff] %vm492, %v1646
      %1701 = vst.msk [vmem:[%s354 + $0x20] sm:$0xff] %vm492, %v1651
      %1702 = vst.msk [vmem:[%s354 + $0x28] sm:$0xff] %vm492, %v1654
      %1703 = vst.msk [vmem:[%s354 + $0x30] sm:$0xff] %vm492, %v1659
      %1704 = vst.msk [vmem:[%s354 + $0x38] sm:$0xff] %vm492, %v1662
      %1705 = vst.msk [vmem:[%s354 + $0x40] sm:$0xff] %vm492, %v1667
      %1706 = vst.msk [vmem:[%s354 + $0x48] sm:$0xff] %vm492, %v1670
      %1707 = vst.msk [vmem:[%s354 + $0x50] sm:$0xff] %vm492, %v1675
      %1708 = vst.msk [vmem:[%s354 + $0x58] sm:$0xff] %vm492, %v1678
      %1709 = vst.msk [vmem:[%s354 + $0x60] sm:$0xff] %vm492, %v1683
      %1710 = vst.msk [vmem:[%s354 + $0x68] sm:$0xff] %vm492, %v1686
      %1711 = vst.msk [vmem:[%s354 + $0x70] sm:$0xff] %vm492, %v1691
      %1712 = vst.msk [vmem:[%s354 + $0x78] sm:$0xff] %vm492, %v1694
      %s1713 = scalar_lea.vmem %s335, 64
      %v1714 = vld [vmem:[%s1713] sm:$0xf]
      %v1715 = vld [vmem:[%s1713 + $0x4] sm:$0xf]
      %v1716 = vld [vmem:[%s1713 + $0x8] sm:$0xf]
      %v1717 = vld [vmem:[%s1713 + $0xc] sm:$0xf]
      %v1718 = vld [vmem:[%s1713 + $0x10] sm:$0xf]
      %v1719 = vld [vmem:[%s1713 + $0x14] sm:$0xf]
      %v1720 = vld [vmem:[%s1713 + $0x18] sm:$0xf]
      %v1721 = vld [vmem:[%s1713 + $0x1c] sm:$0xf]
      %v1722 = vld [vmem:[%s1713 + $0x20] sm:$0xf]
      %v1723 = vld [vmem:[%s1713 + $0x24] sm:$0xf]
      %v1724 = vld [vmem:[%s1713 + $0x28] sm:$0xf]
      %v1725 = vld [vmem:[%s1713 + $0x2c] sm:$0xf]
      %v1726 = vld [vmem:[%s1713 + $0x30] sm:$0xf]
      %v1727 = vld [vmem:[%s1713 + $0x34] sm:$0xf]
      %v1728 = vld [vmem:[%s1713 + $0x38] sm:$0xf]
      %v1729 = vld [vmem:[%s1713 + $0x3c] sm:$0xf]
      %s1730 = scalar_lea.vmem %s341, 128
      %v1731 = vld [vmem:[%s1730] sm:$0xff]
      %v1732 = vld [vmem:[%s1730 + $0x8] sm:$0xff]
      %v1733 = vld [vmem:[%s1730 + $0x10] sm:$0xff]
      %v1734 = vld [vmem:[%s1730 + $0x18] sm:$0xff]
      %v1735 = vld [vmem:[%s1730 + $0x20] sm:$0xff]
      %v1736 = vld [vmem:[%s1730 + $0x28] sm:$0xff]
      %v1737 = vld [vmem:[%s1730 + $0x30] sm:$0xff]
      %v1738 = vld [vmem:[%s1730 + $0x38] sm:$0xff]
      %v1739 = vld [vmem:[%s1730 + $0x40] sm:$0xff]
      %v1740 = vld [vmem:[%s1730 + $0x48] sm:$0xff]
      %v1741 = vld [vmem:[%s1730 + $0x50] sm:$0xff]
      %v1742 = vld [vmem:[%s1730 + $0x58] sm:$0xff]
      %v1743 = vld [vmem:[%s1730 + $0x60] sm:$0xff]
      %v1744 = vld [vmem:[%s1730 + $0x68] sm:$0xff]
      %v1745 = vld [vmem:[%s1730 + $0x70] sm:$0xff]
      %v1746 = vld [vmem:[%s1730 + $0x78] sm:$0xff]
      %v1763 = vunpack.c.l.b16 %v1714
      %v1764 = vunpack.c.l.b16 %v1715
      %v1765 = vunpack.c.l.b16 %v1716
      %v1766 = vunpack.c.l.b16 %v1717
      %v1767 = vunpack.c.l.b16 %v1718
      %v1768 = vunpack.c.l.b16 %v1719
      %v1769 = vunpack.c.l.b16 %v1720
      %v1770 = vunpack.c.l.b16 %v1721
      %v1771 = vunpack.c.l.b16 %v1722
      %v1772 = vunpack.c.l.b16 %v1723
      %v1773 = vunpack.c.l.b16 %v1724
      %v1774 = vunpack.c.l.b16 %v1725
      %v1775 = vunpack.c.l.b16 %v1726
      %v1776 = vunpack.c.l.b16 %v1727
      %v1777 = vunpack.c.l.b16 %v1728
      %v1778 = vunpack.c.l.b16 %v1729
      %v1779 = vpack.c.b16 %v1764, %v1763
      %v1780 = vpack.c.b16 %v1766, %v1765
      %v1781 = vpack.c.b16 %v1768, %v1767
      %v1782 = vpack.c.b16 %v1770, %v1769
      %v1783 = vpack.c.b16 %v1772, %v1771
      %v1784 = vpack.c.b16 %v1774, %v1773
      %v1785 = vpack.c.b16 %v1776, %v1775
      %v1786 = vpack.c.b16 %v1778, %v1777
      %v1788 = vsel %vm492, %v1779, 0
      %v1791 = vsel %vm492, %v1780, 0
      %v1794 = vsel %vm492, %v1781, 0
      %v1797 = vsel %vm492, %v1782, 0
      %v1800 = vsel %vm492, %v1783, 0
      %v1803 = vsel %vm492, %v1784, 0
      %v1806 = vsel %vm492, %v1785, 0
      %v1809 = vsel %vm492, %v1786, 0
      %1811 = vmatprep.subr.bf16.mxu0 0
      %1812 = vmatpush1.bf16.msra.mxu0 0
      %1813 = vmatprep.subr.bf16.mxu0 0
      %1814 = vmatpush1.bf16.msra.mxu0 0
      %1815 = vmatprep.subr.bf16.mxu0 0
      %1816 = vmatpush1.bf16.msra.mxu0 0
      %1817 = vmatprep.subr.bf16.mxu0 0
      %1818 = vmatpush1.bf16.msra.mxu0 0
      %1819 = vmatprep.subr.bf16.mxu0 0
      %1820 = vmatpush1.bf16.msra.mxu0 0
      %1821 = vmatprep.subr.bf16.mxu0 0
      %1822 = vmatpush1.bf16.msra.mxu0 0
      %1823 = vmatprep.subr.bf16.mxu0 %v487
      %1824 = vmatpush1.bf16.msra.mxu0 %v486
      %1825 = vmatprep.subr.bf16.mxu0 %v485
      %1826 = vmatpush1.bf16.msra.mxu0 %v484
      %1827 = vmatprep.subr.bf16.mxu0 0
      %1828 = vmatpush2.bf16.msra.mxu0 0
      %1829 = vmatprep.subr.bf16.mxu0 0
      %1830 = vmatpush2.bf16.msra.mxu0 0
      %1831 = vmatprep.subr.bf16.mxu0 0
      %1832 = vmatpush2.bf16.msra.mxu0 0
      %1833 = vmatprep.subr.bf16.mxu0 0
      %1834 = vmatpush2.bf16.msra.mxu0 0
      %1835 = vmatprep.subr.bf16.mxu0 0
      %1836 = vmatpush2.bf16.msra.mxu0 0
      %1837 = vmatprep.subr.bf16.mxu0 0
      %1838 = vmatpush2.bf16.msra.mxu0 0
      %1839 = vmatprep.subr.bf16.mxu0 0
      %1840 = vmatpush2.bf16.msra.mxu0 0
      %1841 = vmatprep.subr.bf16.mxu0 0
      %1842 = vmatpush2.bf16.msra.mxu0 0
      %1843 = vmatprep.mubr.bf16.mxu0 0
      %1844 = vmatmul.mubr.bf16.gmra.mxu0 %v1788
      %v1845 = vpop.f32.mrf.mxu0
      %v1846 = vadd.f32 0.0, %v1845
      %v1847 = vpop.f32.mrf.mxu0
      %v1848 = vadd.f32 0.0, %v1847
      %v1849 = vpop.f32.mrf.mxu0
      %v1850 = vadd.f32 0.0, %v1849
      %v1851 = vpop.f32.mrf.mxu0
      %v1852 = vadd.f32 0.0, %v1851
      %1853 = vmatprep.mubr.bf16.mxu0 0
      %1854 = vmatmul.mubr.bf16.gmra.mxu0 %v1791
      %v1855 = vpop.f32.mrf.mxu0
      %v1856 = vadd.f32 0.0, %v1855
      %v1857 = vpop.f32.mrf.mxu0
      %v1858 = vadd.f32 0.0, %v1857
      %v1859 = vpop.f32.mrf.mxu0
      %v1860 = vadd.f32 0.0, %v1859
      %v1861 = vpop.f32.mrf.mxu0
      %v1862 = vadd.f32 0.0, %v1861
      %1863 = vmatprep.mubr.bf16.mxu0 0
      %1864 = vmatmul.mubr.bf16.gmra.mxu0 %v1794
      %v1865 = vpop.f32.mrf.mxu0
      %v1866 = vadd.f32 0.0, %v1865
      %v1867 = vpop.f32.mrf.mxu0
      %v1868 = vadd.f32 0.0, %v1867
      %v1869 = vpop.f32.mrf.mxu0
      %v1870 = vadd.f32 0.0, %v1869
      %v1871 = vpop.f32.mrf.mxu0
      %v1872 = vadd.f32 0.0, %v1871
      %1873 = vmatprep.mubr.bf16.mxu0 0
      %1874 = vmatmul.mubr.bf16.gmra.mxu0 %v1797
      %v1875 = vpop.f32.mrf.mxu0
      %v1876 = vadd.f32 0.0, %v1875
      %v1877 = vpop.f32.mrf.mxu0
      %v1878 = vadd.f32 0.0, %v1877
      %v1879 = vpop.f32.mrf.mxu0
      %v1880 = vadd.f32 0.0, %v1879
      %v1881 = vpop.f32.mrf.mxu0
      %v1882 = vadd.f32 0.0, %v1881
      %1883 = vmatprep.mubr.bf16.mxu0 0
      %1884 = vmatmul.mubr.bf16.gmra.mxu0 %v1800
      %v1885 = vpop.f32.mrf.mxu0
      %v1886 = vadd.f32 0.0, %v1885
      %v1887 = vpop.f32.mrf.mxu0
      %v1888 = vadd.f32 0.0, %v1887
      %v1889 = vpop.f32.mrf.mxu0
      %v1890 = vadd.f32 0.0, %v1889
      %v1891 = vpop.f32.mrf.mxu0
      %v1892 = vadd.f32 0.0, %v1891
      %1893 = vmatprep.mubr.bf16.mxu0 0
      %1894 = vmatmul.mubr.bf16.gmra.mxu0 %v1803
      %v1895 = vpop.f32.mrf.mxu0
      %v1896 = vadd.f32 0.0, %v1895
      %v1897 = vpop.f32.mrf.mxu0
      %v1898 = vadd.f32 0.0, %v1897
      %v1899 = vpop.f32.mrf.mxu0
      %v1900 = vadd.f32 0.0, %v1899
      %v1901 = vpop.f32.mrf.mxu0
      %v1902 = vadd.f32 0.0, %v1901
      %1903 = vmatprep.mubr.bf16.mxu0 0
      %1904 = vmatmul.mubr.bf16.gmra.mxu0 %v1806
      %v1905 = vpop.f32.mrf.mxu0
      %v1906 = vadd.f32 0.0, %v1905
      %v1907 = vpop.f32.mrf.mxu0
      %v1908 = vadd.f32 0.0, %v1907
      %v1909 = vpop.f32.mrf.mxu0
      %v1910 = vadd.f32 0.0, %v1909
      %v1911 = vpop.f32.mrf.mxu0
      %v1912 = vadd.f32 0.0, %v1911
      %1913 = vmatprep.mubr.bf16.mxu0 0
      %1914 = vmatmul.mubr.bf16.gmra.mxu0 %v1809
      %v1915 = vpop.f32.mrf.mxu0
      %v1916 = vadd.f32 0.0, %v1915
      %v1917 = vpop.f32.mrf.mxu0
      %v1918 = vadd.f32 0.0, %v1917
      %v1919 = vpop.f32.mrf.mxu0
      %v1920 = vadd.f32 0.0, %v1919
      %v1921 = vpop.f32.mrf.mxu0
      %v1922 = vadd.f32 0.0, %v1921
      %1923 = vdwg.mxu0
      %1924 = vset.pattern.permute.xlu0 0
      %1925 = vperm.xlu0 %1924, %v1731
      %v1926 = vpop.permute.xlu0 %1925
      %1927 = vset.pattern.permute.xlu0 0
      %1928 = vperm.xlu0 %1927, %v1732
      %v1929 = vpop.permute.xlu0 %1928
      %1930 = vset.pattern.permute.xlu0 0
      %1931 = vperm.xlu0 %1930, %v1733
      %v1932 = vpop.permute.xlu0 %1931
      %1933 = vset.pattern.permute.xlu0 0
      %1934 = vperm.xlu0 %1933, %v1734
      %v1935 = vpop.permute.xlu0 %1934
      %1936 = vset.pattern.permute.xlu0 0
      %1937 = vperm.xlu0 %1936, %v1735
      %v1938 = vpop.permute.xlu0 %1937
      %1939 = vset.pattern.permute.xlu0 0
      %1940 = vperm.xlu0 %1939, %v1736
      %v1941 = vpop.permute.xlu0 %1940
      %1942 = vset.pattern.permute.xlu0 0
      %1943 = vperm.xlu0 %1942, %v1737
      %v1944 = vpop.permute.xlu0 %1943
      %1945 = vset.pattern.permute.xlu0 0
      %1946 = vperm.xlu0 %1945, %v1738
      %v1947 = vpop.permute.xlu0 %1946
      %1948 = vset.pattern.permute.xlu0 0
      %1949 = vperm.xlu0 %1948, %v1739
      %v1950 = vpop.permute.xlu0 %1949
      %1951 = vset.pattern.permute.xlu0 0
      %1952 = vperm.xlu0 %1951, %v1740
      %v1953 = vpop.permute.xlu0 %1952
      %1954 = vset.pattern.permute.xlu0 0
      %1955 = vperm.xlu0 %1954, %v1741
      %v1956 = vpop.permute.xlu0 %1955
      %1957 = vset.pattern.permute.xlu0 0
      %1958 = vperm.xlu0 %1957, %v1742
      %v1959 = vpop.permute.xlu0 %1958
      %1960 = vset.pattern.permute.xlu0 0
      %1961 = vperm.xlu0 %1960, %v1743
      %v1962 = vpop.permute.xlu0 %1961
      %1963 = vset.pattern.permute.xlu0 0
      %1964 = vperm.xlu0 %1963, %v1744
      %v1965 = vpop.permute.xlu0 %1964
      %1966 = vset.pattern.permute.xlu0 0
      %1967 = vperm.xlu0 %1966, %v1745
      %v1968 = vpop.permute.xlu0 %1967
      %1969 = vset.pattern.permute.xlu0 0
      %1970 = vperm.xlu0 %1969, %v1746
      %v1971 = vpop.permute.xlu0 %1970
      %vm1972 = vcmp.eq.s32.totalorder %v633, %v1926
      %vm1973 = vcmp.eq.s32.totalorder %v637, %v1926
      %vm1974 = vcmp.eq.s32.totalorder %v633, %v1929
      %vm1975 = vcmp.eq.s32.totalorder %v637, %v1929
      %vm1976 = vcmp.eq.s32.totalorder %v633, %v1932
      %vm1977 = vcmp.eq.s32.totalorder %v637, %v1932
      %vm1978 = vcmp.eq.s32.totalorder %v633, %v1935
      %vm1979 = vcmp.eq.s32.totalorder %v637, %v1935
      %vm1980 = vcmp.eq.s32.totalorder %v633, %v1938
      %vm1981 = vcmp.eq.s32.totalorder %v637, %v1938
      %vm1982 = vcmp.eq.s32.totalorder %v633, %v1941
      %vm1983 = vcmp.eq.s32.totalorder %v637, %v1941
      %vm1984 = vcmp.eq.s32.totalorder %v633, %v1944
      %vm1985 = vcmp.eq.s32.totalorder %v637, %v1944
      %vm1986 = vcmp.eq.s32.totalorder %v633, %v1947
      %vm1987 = vcmp.eq.s32.totalorder %v637, %v1947
      %vm1988 = vcmp.eq.s32.totalorder %v633, %v1950
      %vm1989 = vcmp.eq.s32.totalorder %v637, %v1950
      %vm1990 = vcmp.eq.s32.totalorder %v633, %v1953
      %vm1991 = vcmp.eq.s32.totalorder %v637, %v1953
      %vm1992 = vcmp.eq.s32.totalorder %v633, %v1956
      %vm1993 = vcmp.eq.s32.totalorder %v637, %v1956
      %vm1994 = vcmp.eq.s32.totalorder %v633, %v1959
      %vm1995 = vcmp.eq.s32.totalorder %v637, %v1959
      %vm1996 = vcmp.eq.s32.totalorder %v633, %v1962
      %vm1997 = vcmp.eq.s32.totalorder %v637, %v1962
      %vm1998 = vcmp.eq.s32.totalorder %v633, %v1965
      %vm1999 = vcmp.eq.s32.totalorder %v637, %v1965
      %vm2000 = vcmp.eq.s32.totalorder %v633, %v1968
      %vm2001 = vcmp.eq.s32.totalorder %v637, %v1968
      %vm2002 = vcmp.eq.s32.totalorder %v633, %v1971
      %vm2003 = vcmp.eq.s32.totalorder %v637, %v1971
      %v2004 = vsel %vm1972, %v1846, 0.0
      %v2005 = vsel %vm1973, %v1848, 0.0
      %v2006 = vsel %vm1974, %v1850, 0.0
      %v2007 = vsel %vm1975, %v1852, 0.0
      %v2008 = vsel %vm1976, %v1856, 0.0
      %v2009 = vsel %vm1977, %v1858, 0.0
      %v2010 = vsel %vm1978, %v1860, 0.0
      %v2011 = vsel %vm1979, %v1862, 0.0
      %v2012 = vsel %vm1980, %v1866, 0.0
      %v2013 = vsel %vm1981, %v1868, 0.0
      %v2014 = vsel %vm1982, %v1870, 0.0
      %v2015 = vsel %vm1983, %v1872, 0.0
      %v2016 = vsel %vm1984, %v1876, 0.0
      %v2017 = vsel %vm1985, %v1878, 0.0
      %v2018 = vsel %vm1986, %v1880, 0.0
      %v2019 = vsel %vm1987, %v1882, 0.0
      %v2020 = vsel %vm1988, %v1886, 0.0
      %v2021 = vsel %vm1989, %v1888, 0.0
      %v2022 = vsel %vm1990, %v1890, 0.0
      %v2023 = vsel %vm1991, %v1892, 0.0
      %v2024 = vsel %vm1992, %v1896, 0.0
      %v2025 = vsel %vm1993, %v1898, 0.0
      %v2026 = vsel %vm1994, %v1900, 0.0
      %v2027 = vsel %vm1995, %v1902, 0.0
      %v2028 = vsel %vm1996, %v1906, 0.0
      %v2029 = vsel %vm1997, %v1908, 0.0
      %v2030 = vsel %vm1998, %v1910, 0.0
      %v2031 = vsel %vm1999, %v1912, 0.0
      %v2032 = vsel %vm2000, %v1916, 0.0
      %v2033 = vsel %vm2001, %v1918, 0.0
      %v2034 = vsel %vm2002, %v1920, 0.0
      %v2035 = vsel %vm2003, %v1922, 0.0
      %v2036 = vunpack.c.l.bf16 %v1714
      %v2037 = vunpack.c.l.bf16 %v1715
      %v2038 = vunpack.c.l.bf16 %v1716
      %v2039 = vunpack.c.l.bf16 %v1717
      %v2040 = vunpack.c.l.bf16 %v1718
      %v2041 = vunpack.c.l.bf16 %v1719
      %v2042 = vunpack.c.l.bf16 %v1720
      %v2043 = vunpack.c.l.bf16 %v1721
      %v2044 = vunpack.c.l.bf16 %v1722
      %v2045 = vunpack.c.l.bf16 %v1723
      %v2046 = vunpack.c.l.bf16 %v1724
      %v2047 = vunpack.c.l.bf16 %v1725
      %v2048 = vunpack.c.l.bf16 %v1726
      %v2049 = vunpack.c.l.bf16 %v1727
      %v2050 = vunpack.c.l.bf16 %v1728
      %v2051 = vunpack.c.l.bf16 %v1729
      %v2052 = vpack.c.bf16 %v2006, %v2004
      %v2053 = vpack.c.bf16 %v2007, %v2005
      %v2054 = vpack.c.bf16 %v2010, %v2008
      %v2055 = vpack.c.bf16 %v2011, %v2009
      %v2056 = vpack.c.bf16 %v2014, %v2012
      %v2057 = vpack.c.bf16 %v2015, %v2013
      %v2058 = vpack.c.bf16 %v2018, %v2016
      %v2059 = vpack.c.bf16 %v2019, %v2017
      %v2060 = vpack.c.bf16 %v2022, %v2020
      %v2061 = vpack.c.bf16 %v2023, %v2021
      %v2062 = vpack.c.bf16 %v2026, %v2024
      %v2063 = vpack.c.bf16 %v2027, %v2025
      %v2064 = vpack.c.bf16 %v2030, %v2028
      %v2065 = vpack.c.bf16 %v2031, %v2029
      %v2066 = vpack.c.bf16 %v2034, %v2032
      %v2067 = vpack.c.bf16 %v2035, %v2033
      %v2069 = vsel %vm866, %v2053, 0
      %v2072 = vsel %vm866, %v2055, 0
      %v2075 = vsel %vm866, %v2057, 0
      %v2078 = vsel %vm866, %v2059, 0
      %v2081 = vsel %vm866, %v2061, 0
      %v2084 = vsel %vm866, %v2063, 0
      %v2087 = vsel %vm866, %v2065, 0
      %v2090 = vsel %vm866, %v2067, 0
      %2092 = vmatprep.subr.bf16.mxu0 0
      %2093 = vmatpush1.bf16.msra.mxu0 %v845
      %2094 = vmatprep.subr.bf16.mxu0 0
      %2095 = vmatpush1.bf16.msra.mxu0 %v844
      %2096 = vmatprep.subr.bf16.mxu0 0
      %2097 = vmatpush1.bf16.msra.mxu0 %v843
      %2098 = vmatprep.subr.bf16.mxu0 0
      %2099 = vmatpush1.bf16.msra.mxu0 %v842
      %2100 = vmatprep.subr.bf16.mxu0 0
      %2101 = vmatpush1.bf16.msra.mxu0 %v841
      %2102 = vmatprep.subr.bf16.mxu0 0
      %2103 = vmatpush1.bf16.msra.mxu0 %v840
      %2104 = vmatprep.subr.bf16.mxu0 0
      %2105 = vmatpush1.bf16.msra.mxu0 %v839
      %2106 = vmatprep.subr.bf16.mxu0 0
      %2107 = vmatpush1.bf16.msra.mxu0 %v838
      %2108 = vmatprep.subr.bf16.mxu0 0
      %2109 = vmatpush2.bf16.msra.mxu0 0
      %2110 = vmatprep.subr.bf16.mxu0 0
      %2111 = vmatpush2.bf16.msra.mxu0 0
      %2112 = vmatprep.subr.bf16.mxu0 0
      %2113 = vmatpush2.bf16.msra.mxu0 %v851
      %2114 = vmatprep.subr.bf16.mxu0 0
      %2115 = vmatpush2.bf16.msra.mxu0 %v850
      %2116 = vmatprep.subr.bf16.mxu0 0
      %2117 = vmatpush2.bf16.msra.mxu0 %v849
      %2118 = vmatprep.subr.bf16.mxu0 0
      %2119 = vmatpush2.bf16.msra.mxu0 %v848
      %2120 = vmatprep.subr.bf16.mxu0 0
      %2121 = vmatpush2.bf16.msra.mxu0 %v847
      %2122 = vmatprep.subr.bf16.mxu0 0
      %2123 = vmatpush2.bf16.msra.mxu0 %v846
      %2124 = vmatprep.mubr.bf16.mxu0 %v2069
      %2125 = vmatmul.mubr.bf16.gmra.mxu0 %v2052
      %v2126 = vpop.f32.mrf.mxu0
      %v2127 = vadd.f32 0.0, %v2126
      %v2128 = vpop.f32.mrf.mxu0
      %v2129 = vpop.f32.mrf.mxu0
      %v2130 = vadd.f32 0.0, %v2129
      %v2131 = vpop.f32.mrf.mxu0
      %2132 = vmatprep.mubr.bf16.mxu0 %v2072
      %2133 = vmatmul.mubr.bf16.gmra.mxu0 %v2054
      %v2134 = vpop.f32.mrf.mxu0
      %v2135 = vadd.f32 0.0, %v2134
      %v2136 = vpop.f32.mrf.mxu0
      %v2137 = vpop.f32.mrf.mxu0
      %v2138 = vadd.f32 0.0, %v2137
      %v2139 = vpop.f32.mrf.mxu0
      %2140 = vmatprep.mubr.bf16.mxu0 %v2075
      %2141 = vmatmul.mubr.bf16.gmra.mxu0 %v2056
      %v2142 = vpop.f32.mrf.mxu0
      %v2143 = vadd.f32 0.0, %v2142
      %v2144 = vpop.f32.mrf.mxu0
      %v2145 = vpop.f32.mrf.mxu0
      %v2146 = vadd.f32 0.0, %v2145
      %v2147 = vpop.f32.mrf.mxu0
      %2148 = vmatprep.mubr.bf16.mxu0 %v2078
      %2149 = vmatmul.mubr.bf16.gmra.mxu0 %v2058
      %v2150 = vpop.f32.mrf.mxu0
      %v2151 = vadd.f32 0.0, %v2150
      %v2152 = vpop.f32.mrf.mxu0
      %v2153 = vpop.f32.mrf.mxu0
      %v2154 = vadd.f32 0.0, %v2153
      %v2155 = vpop.f32.mrf.mxu0
      %2156 = vmatprep.mubr.bf16.mxu0 %v2081
      %2157 = vmatmul.mubr.bf16.gmra.mxu0 %v2060
      %v2158 = vpop.f32.mrf.mxu0
      %v2159 = vadd.f32 0.0, %v2158
      %v2160 = vpop.f32.mrf.mxu0
      %v2161 = vpop.f32.mrf.mxu0
      %v2162 = vadd.f32 0.0, %v2161
      %v2163 = vpop.f32.mrf.mxu0
      %2164 = vmatprep.mubr.bf16.mxu0 %v2084
      %2165 = vmatmul.mubr.bf16.gmra.mxu0 %v2062
      %v2166 = vpop.f32.mrf.mxu0
      %v2167 = vadd.f32 0.0, %v2166
      %v2168 = vpop.f32.mrf.mxu0
      %v2169 = vpop.f32.mrf.mxu0
      %v2170 = vadd.f32 0.0, %v2169
      %v2171 = vpop.f32.mrf.mxu0
      %2172 = vmatprep.mubr.bf16.mxu0 %v2087
      %2173 = vmatmul.mubr.bf16.gmra.mxu0 %v2064
      %v2174 = vpop.f32.mrf.mxu0
      %v2175 = vadd.f32 0.0, %v2174
      %v2176 = vpop.f32.mrf.mxu0
      %v2177 = vpop.f32.mrf.mxu0
      %v2178 = vadd.f32 0.0, %v2177
      %v2179 = vpop.f32.mrf.mxu0
      %2180 = vmatprep.mubr.bf16.mxu0 %v2090
      %2181 = vmatmul.mubr.bf16.gmra.mxu0 %v2066
      %v2182 = vpop.f32.mrf.mxu0
      %v2183 = vadd.f32 0.0, %v2182
      %v2184 = vpop.f32.mrf.mxu0
      %v2185 = vpop.f32.mrf.mxu0
      %v2186 = vadd.f32 0.0, %v2185
      %v2187 = vpop.f32.mrf.mxu0
      %2188 = vdwg.mxu0
      %v2189 = vadd.f32 %v2036, %v2127
      %v2190 = vadd.f32 %v2037, %v2130
      %v2191 = vadd.f32 %v2038, %v2135
      %v2192 = vadd.f32 %v2039, %v2138
      %v2193 = vadd.f32 %v2040, %v2143
      %v2194 = vadd.f32 %v2041, %v2146
      %v2195 = vadd.f32 %v2042, %v2151
      %v2196 = vadd.f32 %v2043, %v2154
      %v2197 = vadd.f32 %v2044, %v2159
      %v2198 = vadd.f32 %v2045, %v2162
      %v2199 = vadd.f32 %v2046, %v2167
      %v2200 = vadd.f32 %v2047, %v2170
      %v2201 = vadd.f32 %v2048, %v2175
      %v2202 = vadd.f32 %v2049, %v2178
      %v2203 = vadd.f32 %v2050, %v2183
      %v2204 = vadd.f32 %v2051, %v2186
      %v2205 = vpack.c.bf16 %v2190, %v2189
      %v2206 = vpack.c.bf16 %v2192, %v2191
      %v2207 = vpack.c.bf16 %v2194, %v2193
      %v2208 = vpack.c.bf16 %v2196, %v2195
      %v2209 = vpack.c.bf16 %v2198, %v2197
      %v2210 = vpack.c.bf16 %v2200, %v2199
      %v2211 = vpack.c.bf16 %v2202, %v2201
      %v2212 = vpack.c.bf16 %v2204, %v2203
      %v2214 = vsel %vm492, %v2205, 0
      %v2217 = vsel %vm492, %v2206, 0
      %v2220 = vsel %vm492, %v2207, 0
      %v2223 = vsel %vm492, %v2208, 0
      %v2226 = vsel %vm492, %v2209, 0
      %v2229 = vsel %vm492, %v2210, 0
      %v2232 = vsel %vm492, %v2211, 0
      %v2235 = vsel %vm492, %v2212, 0
      %2237 = vmatprep.subr.bf16.mxu0 0
      %2238 = vmatpush1.bf16.msra.mxu0 0
      %2239 = vmatprep.subr.bf16.mxu0 0
      %2240 = vmatpush1.bf16.msra.mxu0 0
      %2241 = vmatprep.subr.bf16.mxu0 0
      %2242 = vmatpush1.bf16.msra.mxu0 0
      %2243 = vmatprep.subr.bf16.mxu0 0
      %2244 = vmatpush1.bf16.msra.mxu0 0
      %2245 = vmatprep.subr.bf16.mxu0 0
      %2246 = vmatpush1.bf16.msra.mxu0 0
      %2247 = vmatprep.subr.bf16.mxu0 0
      %2248 = vmatpush1.bf16.msra.mxu0 0
      %2249 = vmatprep.subr.bf16.mxu0 0
      %2250 = vmatpush1.bf16.msra.mxu0 %v396
      %2251 = vmatprep.subr.bf16.mxu0 0
      %2252 = vmatpush1.bf16.msra.mxu0 %v395
      %2253 = vmatprep.subr.bf16.mxu0 0
      %2254 = vmatpush2.bf16.msra.mxu0 0
      %2255 = vmatprep.subr.bf16.mxu0 0
      %2256 = vmatpush2.bf16.msra.mxu0 0
      %2257 = vmatprep.subr.bf16.mxu0 0
      %2258 = vmatpush2.bf16.msra.mxu0 0
      %2259 = vmatprep.subr.bf16.mxu0 0
      %2260 = vmatpush2.bf16.msra.mxu0 0
      %2261 = vmatprep.subr.bf16.mxu0 0
      %2262 = vmatpush2.bf16.msra.mxu0 0
      %2263 = vmatprep.subr.bf16.mxu0 0
      %2264 = vmatpush2.bf16.msra.mxu0 0
      %2265 = vmatprep.subr.bf16.mxu0 0
      %2266 = vmatpush2.bf16.msra.mxu0 0
      %2267 = vmatprep.subr.bf16.mxu0 0
      %2268 = vmatpush2.bf16.msra.mxu0 0
      %2269 = vmatprep.mubr.bf16.mxu0 0
      %2270 = vmatmul.mubr.bf16.gmra.mxu0 %v2214
      %v2271 = vpop.f32.mrf.mxu0
      %v2272 = vadd.f32 0.0, %v2271
      %v2273 = vpop.f32.mrf.mxu0
      %v2274 = vpop.f32.mrf.mxu0
      %v2275 = vadd.f32 0.0, %v2274
      %v2276 = vpop.f32.mrf.mxu0
      %2277 = vmatprep.mubr.bf16.mxu0 0
      %2278 = vmatmul.mubr.bf16.gmra.mxu0 %v2217
      %v2279 = vpop.f32.mrf.mxu0
      %v2280 = vadd.f32 0.0, %v2279
      %v2281 = vpop.f32.mrf.mxu0
      %v2282 = vpop.f32.mrf.mxu0
      %v2283 = vadd.f32 0.0, %v2282
      %v2284 = vpop.f32.mrf.mxu0
      %2285 = vmatprep.mubr.bf16.mxu0 0
      %2286 = vmatmul.mubr.bf16.gmra.mxu0 %v2220
      %v2287 = vpop.f32.mrf.mxu0
      %v2288 = vadd.f32 0.0, %v2287
      %v2289 = vpop.f32.mrf.mxu0
      %v2290 = vpop.f32.mrf.mxu0
      %v2291 = vadd.f32 0.0, %v2290
      %v2292 = vpop.f32.mrf.mxu0
      %2293 = vmatprep.mubr.bf16.mxu0 0
      %2294 = vmatmul.mubr.bf16.gmra.mxu0 %v2223
      %v2295 = vpop.f32.mrf.mxu0
      %v2296 = vadd.f32 0.0, %v2295
      %v2297 = vpop.f32.mrf.mxu0
      %v2298 = vpop.f32.mrf.mxu0
      %v2299 = vadd.f32 0.0, %v2298
      %v2300 = vpop.f32.mrf.mxu0
      %2301 = vmatprep.mubr.bf16.mxu0 0
      %2302 = vmatmul.mubr.bf16.gmra.mxu0 %v2226
      %v2303 = vpop.f32.mrf.mxu0
      %v2304 = vadd.f32 0.0, %v2303
      %v2305 = vpop.f32.mrf.mxu0
      %v2306 = vpop.f32.mrf.mxu0
      %v2307 = vadd.f32 0.0, %v2306
      %v2308 = vpop.f32.mrf.mxu0
      %2309 = vmatprep.mubr.bf16.mxu0 0
      %2310 = vmatmul.mubr.bf16.gmra.mxu0 %v2229
      %v2311 = vpop.f32.mrf.mxu0
      %v2312 = vadd.f32 0.0, %v2311
      %v2313 = vpop.f32.mrf.mxu0
      %v2314 = vpop.f32.mrf.mxu0
      %v2315 = vadd.f32 0.0, %v2314
      %v2316 = vpop.f32.mrf.mxu0
      %2317 = vmatprep.mubr.bf16.mxu0 0
      %2318 = vmatmul.mubr.bf16.gmra.mxu0 %v2232
      %v2319 = vpop.f32.mrf.mxu0
      %v2320 = vadd.f32 0.0, %v2319
      %v2321 = vpop.f32.mrf.mxu0
      %v2322 = vpop.f32.mrf.mxu0
      %v2323 = vadd.f32 0.0, %v2322
      %v2324 = vpop.f32.mrf.mxu0
      %2325 = vmatprep.mubr.bf16.mxu0 0
      %2326 = vmatmul.mubr.bf16.gmra.mxu0 %v2235
      %v2327 = vpop.f32.mrf.mxu0
      %v2328 = vadd.f32 0.0, %v2327
      %v2329 = vpop.f32.mrf.mxu0
      %v2330 = vpop.f32.mrf.mxu0
      %v2331 = vadd.f32 0.0, %v2330
      %v2332 = vpop.f32.mrf.mxu0
      %2333 = vdwg.mxu0
      %2334 = vmatprep.subr.bf16.mxu0 0
      %2335 = vmatpush1.bf16.xpose.msra.mxu0 %v2235
      %2336 = vmatprep.subr.bf16.mxu0 0
      %2337 = vmatpush1.bf16.xpose.msra.mxu0 %v2232
      %2338 = vmatprep.subr.bf16.mxu0 0
      %2339 = vmatpush1.bf16.xpose.msra.mxu0 %v2229
      %2340 = vmatprep.subr.bf16.mxu0 0
      %2341 = vmatpush1.bf16.xpose.msra.mxu0 %v2226
      %2342 = vmatprep.subr.bf16.mxu0 0
      %2343 = vmatpush1.bf16.xpose.msra.mxu0 %v2223
      %2344 = vmatprep.subr.bf16.mxu0 0
      %2345 = vmatpush1.bf16.xpose.msra.mxu0 %v2220
      %2346 = vmatprep.subr.bf16.mxu0 0
      %2347 = vmatpush1.bf16.xpose.msra.mxu0 %v2217
      %2348 = vmatprep.subr.bf16.mxu0 0
      %2349 = vmatpush1.bf16.xpose.msra.mxu0 %v2214
      %2350 = vmatprep.subr.bf16.mxu0 0
      %2351 = vmatpush2.bf16.xpose.msra.mxu0 0
      %2352 = vmatprep.subr.bf16.mxu0 0
      %2353 = vmatpush2.bf16.xpose.msra.mxu0 0
      %2354 = vmatprep.subr.bf16.mxu0 0
      %2355 = vmatpush2.bf16.xpose.msra.mxu0 0
      %2356 = vmatprep.subr.bf16.mxu0 0
      %2357 = vmatpush2.bf16.xpose.msra.mxu0 0
      %2358 = vmatprep.subr.bf16.mxu0 0
      %2359 = vmatpush2.bf16.xpose.msra.mxu0 0
      %2360 = vmatprep.subr.bf16.mxu0 0
      %2361 = vmatpush2.bf16.xpose.msra.mxu0 0
      %2362 = vmatprep.subr.bf16.mxu0 0
      %2363 = vmatpush2.bf16.xpose.msra.mxu0 0
      %2364 = vmatprep.subr.bf16.mxu0 0
      %2365 = vmatpush2.bf16.xpose.msra.mxu0 0
      %2366 = vmatprep.mubr.bf16.mxu0 0
      %2367 = vmatmul.mubr.bf16.gmra.mxu0 %v1134
      %v2368 = vpop.f32.mrf.mxu0
      %v2369 = vadd.f32 0.0, %v2368
      %v2370 = vpop.f32.mrf.mxu0
      %v2371 = vpop.f32.mrf.mxu0
      %v2372 = vpop.f32.mrf.mxu0
      %2373 = vdwg.mxu0
      %2375 = vset.pattern.permute.xlu0 0
      %2376 = vperm.xlu0 %2375, %v2272
      %v2377 = vpop.permute.xlu0 %2376
      %2380 = vset.pattern.permute.xlu0 0
      %2381 = vperm.xlu0 %2380, %v2275
      %v2382 = vpop.permute.xlu0 %2381
      %2385 = vset.pattern.permute.xlu0 0
      %2386 = vperm.xlu0 %2385, %v2280
      %v2387 = vpop.permute.xlu0 %2386
      %2390 = vset.pattern.permute.xlu0 0
      %2391 = vperm.xlu0 %2390, %v2283
      %v2392 = vpop.permute.xlu0 %2391
      %2395 = vset.pattern.permute.xlu0 0
      %2396 = vperm.xlu0 %2395, %v2288
      %v2397 = vpop.permute.xlu0 %2396
      %2400 = vset.pattern.permute.xlu0 0
      %2401 = vperm.xlu0 %2400, %v2291
      %v2402 = vpop.permute.xlu0 %2401
      %2405 = vset.pattern.permute.xlu0 0
      %2406 = vperm.xlu0 %2405, %v2296
      %v2407 = vpop.permute.xlu0 %2406
      %2410 = vset.pattern.permute.xlu0 0
      %2411 = vperm.xlu0 %2410, %v2299
      %v2412 = vpop.permute.xlu0 %2411
      %2415 = vset.pattern.permute.xlu0 0
      %2416 = vperm.xlu0 %2415, %v2304
      %v2417 = vpop.permute.xlu0 %2416
      %2420 = vset.pattern.permute.xlu0 0
      %2421 = vperm.xlu0 %2420, %v2307
      %v2422 = vpop.permute.xlu0 %2421
      %2425 = vset.pattern.permute.xlu0 0
      %2426 = vperm.xlu0 %2425, %v2312
      %v2427 = vpop.permute.xlu0 %2426
      %2430 = vset.pattern.permute.xlu0 0
      %2431 = vperm.xlu0 %2430, %v2315
      %v2432 = vpop.permute.xlu0 %2431
      %2435 = vset.pattern.permute.xlu0 0
      %2436 = vperm.xlu0 %2435, %v2320
      %v2437 = vpop.permute.xlu0 %2436
      %2440 = vset.pattern.permute.xlu0 0
      %2441 = vperm.xlu0 %2440, %v2323
      %v2442 = vpop.permute.xlu0 %2441
      %2445 = vset.pattern.permute.xlu0 0
      %2446 = vperm.xlu0 %2445, %v2328
      %v2447 = vpop.permute.xlu0 %2446
      %2450 = vset.pattern.permute.xlu0 0
      %2451 = vperm.xlu0 %2450, %v2331
      %v2452 = vpop.permute.xlu0 %2451
      %v2454 = vlaneseq
      %v2455 = vshrl.u32 %v2454, 7
      %v2456 = vsub.s32 0, %v2455
      %v2457 = vrot.slane %v2369, %v2456
      %v2458 = vadd.f32 %v2377, %v2457
      %v2459 = vadd.f32 %v2382, %v2457
      %v2460 = vadd.f32 %v2387, %v2457
      %v2461 = vadd.f32 %v2392, %v2457
      %v2462 = vadd.f32 %v2397, %v2457
      %v2463 = vadd.f32 %v2402, %v2457
      %v2464 = vadd.f32 %v2407, %v2457
      %v2465 = vadd.f32 %v2412, %v2457
      %v2466 = vadd.f32 %v2417, %v2457
      %v2467 = vadd.f32 %v2422, %v2457
      %v2468 = vadd.f32 %v2427, %v2457
      %v2469 = vadd.f32 %v2432, %v2457
      %v2470 = vadd.f32 %v2437, %v2457
      %v2471 = vadd.f32 %v2442, %v2457
      %v2472 = vadd.f32 %v2447, %v2457
      %v2473 = vadd.f32 %v2452, %v2457
      %v2474 = vmul.f32 %v2458, 0.2
      %v2475 = vmul.f32 %v2459, 0.2
      %v2476 = vmul.f32 %v2460, 0.2
      %v2477 = vmul.f32 %v2461, 0.2
      %v2478 = vmul.f32 %v2462, 0.2
      %v2479 = vmul.f32 %v2463, 0.2
      %v2480 = vmul.f32 %v2464, 0.2
      %v2481 = vmul.f32 %v2465, 0.2
      %v2482 = vmul.f32 %v2466, 0.2
      %v2483 = vmul.f32 %v2467, 0.2
      %v2484 = vmul.f32 %v2468, 0.2
      %v2485 = vmul.f32 %v2469, 0.2
      %v2486 = vmul.f32 %v2470, 0.2
      %v2487 = vmul.f32 %v2471, 0.2
      %v2488 = vmul.f32 %v2472, 0.2
      %v2489 = vmul.f32 %v2473, 0.2
      %v2490 = vmax.f32 %v2458, %v2474
      %v2491 = vmax.f32 %v2459, %v2475
      %v2492 = vmax.f32 %v2460, %v2476
      %v2493 = vmax.f32 %v2461, %v2477
      %v2494 = vmax.f32 %v2462, %v2478
      %v2495 = vmax.f32 %v2463, %v2479
      %v2496 = vmax.f32 %v2464, %v2480
      %v2497 = vmax.f32 %v2465, %v2481
      %v2498 = vmax.f32 %v2466, %v2482
      %v2499 = vmax.f32 %v2467, %v2483
      %v2500 = vmax.f32 %v2468, %v2484
      %v2501 = vmax.f32 %v2469, %v2485
      %v2502 = vmax.f32 %v2470, %v2486
      %v2503 = vmax.f32 %v2471, %v2487
      %v2504 = vmax.f32 %v2472, %v2488
      %v2505 = vmax.f32 %v2473, %v2489
      %s2506 = scalar_lea.vmem %s348, 32
      %v2507 = vld [vmem:[%s2506] sm:$0xff]
      %v2508 = vld [vmem:[%s2506 + $0x8] sm:$0xff]
      %v2509 = vld [vmem:[%s2506 + $0x10] sm:$0xff]
      %v2510 = vld [vmem:[%s2506 + $0x18] sm:$0xff]
      %vm2511 = vnez %v2507
      %vm2512 = vnez %v2508
      %vm2513 = vnez %v2509
      %vm2514 = vnez %v2510
      %v2515 = vsel %vm2511, 16843009, 0
      %v2516 = vsel %vm2512, 16843009, 0
      %v2517 = vsel %vm2513, 16843009, 0
      %v2518 = vsel %vm2514, 16843009, 0
      %v2519 = vunpack.c.0.s8 %v2515
      %v2520 = vunpack.c.1.s8 %v2515
      %v2521 = vunpack.c.2.s8 %v2515
      %v2522 = vunpack.c.3.s8 %v2515
      %v2523 = vunpack.c.0.s8 %v2516
      %v2524 = vunpack.c.1.s8 %v2516
      %v2525 = vunpack.c.2.s8 %v2516
      %v2526 = vunpack.c.3.s8 %v2516
      %v2527 = vunpack.c.0.s8 %v2517
      %v2528 = vunpack.c.1.s8 %v2517
      %v2529 = vunpack.c.2.s8 %v2517
      %v2530 = vunpack.c.3.s8 %v2517
      %v2531 = vunpack.c.0.s8 %v2518
      %v2532 = vunpack.c.1.s8 %v2518
      %v2533 = vunpack.c.2.s8 %v2518
      %v2534 = vunpack.c.3.s8 %v2518
      %v2535 = vpack.c.b16 %v2519, %v2519
      %v2536 = vpack.c.b8 %v2535, %v2535
      %v2537 = vpack.c.b16 %v2520, %v2520
      %v2538 = vpack.c.b8 %v2537, %v2537
      %v2539 = vpack.c.b16 %v2521, %v2521
      %v2540 = vpack.c.b8 %v2539, %v2539
      %v2541 = vpack.c.b16 %v2522, %v2522
      %v2542 = vpack.c.b8 %v2541, %v2541
      %v2543 = vpack.c.b16 %v2523, %v2523
      %v2544 = vpack.c.b8 %v2543, %v2543
      %v2545 = vpack.c.b16 %v2524, %v2524
      %v2546 = vpack.c.b8 %v2545, %v2545
      %v2547 = vpack.c.b16 %v2525, %v2525
      %v2548 = vpack.c.b8 %v2547, %v2547
      %v2549 = vpack.c.b16 %v2526, %v2526
      %v2550 = vpack.c.b8 %v2549, %v2549
      %v2551 = vpack.c.b16 %v2527, %v2527
      %v2552 = vpack.c.b8 %v2551, %v2551
      %v2553 = vpack.c.b16 %v2528, %v2528
      %v2554 = vpack.c.b8 %v2553, %v2553
      %v2555 = vpack.c.b16 %v2529, %v2529
      %v2556 = vpack.c.b8 %v2555, %v2555
      %v2557 = vpack.c.b16 %v2530, %v2530
      %v2558 = vpack.c.b8 %v2557, %v2557
      %v2559 = vpack.c.b16 %v2531, %v2531
      %v2560 = vpack.c.b8 %v2559, %v2559
      %v2561 = vpack.c.b16 %v2532, %v2532
      %v2562 = vpack.c.b8 %v2561, %v2561
      %v2563 = vpack.c.b16 %v2533, %v2533
      %v2564 = vpack.c.b8 %v2563, %v2563
      %v2565 = vpack.c.b16 %v2534, %v2534
      %v2566 = vpack.c.b8 %v2565, %v2565
      %vm2567 = vnez %v2536
      %vm2568 = vnez %v2538
      %vm2569 = vnez %v2540
      %vm2570 = vnez %v2542
      %vm2571 = vnez %v2544
      %vm2572 = vnez %v2546
      %vm2573 = vnez %v2548
      %vm2574 = vnez %v2550
      %vm2575 = vnez %v2552
      %vm2576 = vnez %v2554
      %vm2577 = vnez %v2556
      %vm2578 = vnez %v2558
      %vm2579 = vnez %v2560
      %vm2580 = vnez %v2562
      %vm2581 = vnez %v2564
      %vm2582 = vnez %v2566
      %v2583 = vsel %vm2567, 16843009, 0
      %v2584 = vsel %vm2568, 16843009, 0
      %v2585 = vsel %vm2569, 16843009, 0
      %v2586 = vsel %vm2570, 16843009, 0
      %v2587 = vsel %vm2571, 16843009, 0
      %v2588 = vsel %vm2572, 16843009, 0
      %v2589 = vsel %vm2573, 16843009, 0
      %v2590 = vsel %vm2574, 16843009, 0
      %v2591 = vsel %vm2575, 16843009, 0
      %v2592 = vsel %vm2576, 16843009, 0
      %v2593 = vsel %vm2577, 16843009, 0
      %v2594 = vsel %vm2578, 16843009, 0
      %v2595 = vsel %vm2579, 16843009, 0
      %v2596 = vsel %vm2580, 16843009, 0
      %v2597 = vsel %vm2581, 16843009, 0
      %v2598 = vsel %vm2582, 16843009, 0
      %v2599 = vunpack.c.0.s8 %v2583
      %v2600 = vunpack.c.0.s8 %v2584
      %v2601 = vunpack.c.0.s8 %v2585
      %v2602 = vunpack.c.0.s8 %v2586
      %v2603 = vunpack.c.0.s8 %v2587
      %v2604 = vunpack.c.0.s8 %v2588
      %v2605 = vunpack.c.0.s8 %v2589
      %v2606 = vunpack.c.0.s8 %v2590
      %v2607 = vunpack.c.0.s8 %v2591
      %v2608 = vunpack.c.0.s8 %v2592
      %v2609 = vunpack.c.0.s8 %v2593
      %v2610 = vunpack.c.0.s8 %v2594
      %v2611 = vunpack.c.0.s8 %v2595
      %v2612 = vunpack.c.0.s8 %v2596
      %v2613 = vunpack.c.0.s8 %v2597
      %v2614 = vunpack.c.0.s8 %v2598
      %vm2615 = vcmp.ne.s32.totalorder %v2599, 0
      %vm2616 = vcmp.ne.s32.totalorder %v2600, 0
      %vm2617 = vcmp.ne.s32.totalorder %v2601, 0
      %vm2618 = vcmp.ne.s32.totalorder %v2602, 0
      %vm2619 = vcmp.ne.s32.totalorder %v2603, 0
      %vm2620 = vcmp.ne.s32.totalorder %v2604, 0
      %vm2621 = vcmp.ne.s32.totalorder %v2605, 0
      %vm2622 = vcmp.ne.s32.totalorder %v2606, 0
      %vm2623 = vcmp.ne.s32.totalorder %v2607, 0
      %vm2624 = vcmp.ne.s32.totalorder %v2608, 0
      %vm2625 = vcmp.ne.s32.totalorder %v2609, 0
      %vm2626 = vcmp.ne.s32.totalorder %v2610, 0
      %vm2627 = vcmp.ne.s32.totalorder %v2611, 0
      %vm2628 = vcmp.ne.s32.totalorder %v2612, 0
      %vm2629 = vcmp.ne.s32.totalorder %v2613, 0
      %vm2630 = vcmp.ne.s32.totalorder %v2614, 0
      %v2631 = vsel %vm2615, %v2490, -1e+30
      %v2632 = vsel %vm2616, %v2491, -1e+30
      %v2633 = vsel %vm2617, %v2492, -1e+30
      %v2634 = vsel %vm2618, %v2493, -1e+30
      %v2635 = vsel %vm2619, %v2494, -1e+30
      %v2636 = vsel %vm2620, %v2495, -1e+30
      %v2637 = vsel %vm2621, %v2496, -1e+30
      %v2638 = vsel %vm2622, %v2497, -1e+30
      %v2639 = vsel %vm2623, %v2498, -1e+30
      %v2640 = vsel %vm2624, %v2499, -1e+30
      %v2641 = vsel %vm2625, %v2500, -1e+30
      %v2642 = vsel %vm2626, %v2501, -1e+30
      %v2643 = vsel %vm2627, %v2502, -1e+30
      %v2644 = vsel %vm2628, %v2503, -1e+30
      %v2645 = vsel %vm2629, %v2504, -1e+30
      %v2646 = vsel %vm2630, %v2505, -1e+30
      %2647 = vmax.xlane.f32.xlu0 %v2631
      %v2648 = vpop.xlane.xlu0 %2647
      %2649 = vmax.xlane.f32.xlu0 %v2632
      %v2650 = vpop.xlane.xlu0 %2649
      %2651 = vmax.xlane.f32.xlu0 %v2633
      %v2652 = vpop.xlane.xlu0 %2651
      %2653 = vmax.xlane.f32.xlu0 %v2634
      %v2654 = vpop.xlane.xlu0 %2653
      %2655 = vmax.xlane.f32.xlu0 %v2635
      %v2656 = vpop.xlane.xlu0 %2655
      %2657 = vmax.xlane.f32.xlu0 %v2636
      %v2658 = vpop.xlane.xlu0 %2657
      %2659 = vmax.xlane.f32.xlu0 %v2637
      %v2660 = vpop.xlane.xlu0 %2659
      %2661 = vmax.xlane.f32.xlu0 %v2638
      %v2662 = vpop.xlane.xlu0 %2661
      %2663 = vmax.xlane.f32.xlu0 %v2639
      %v2664 = vpop.xlane.xlu0 %2663
      %2665 = vmax.xlane.f32.xlu0 %v2640
      %v2666 = vpop.xlane.xlu0 %2665
      %2667 = vmax.xlane.f32.xlu0 %v2641
      %v2668 = vpop.xlane.xlu0 %2667
      %2669 = vmax.xlane.f32.xlu0 %v2642
      %v2670 = vpop.xlane.xlu0 %2669
      %2671 = vmax.xlane.f32.xlu0 %v2643
      %v2672 = vpop.xlane.xlu0 %2671
      %2673 = vmax.xlane.f32.xlu0 %v2644
      %v2674 = vpop.xlane.xlu0 %2673
      %2675 = vmax.xlane.f32.xlu0 %v2645
      %v2676 = vpop.xlane.xlu0 %2675
      %2677 = vmax.xlane.f32.xlu0 %v2646
      %v2678 = vpop.xlane.xlu0 %2677
      %v2679 = vsub.f32 %v2631, %v2648
      %v2680 = vsub.f32 %v2632, %v2650
      %v2681 = vsub.f32 %v2633, %v2652
      %v2682 = vsub.f32 %v2634, %v2654
      %v2683 = vsub.f32 %v2635, %v2656
      %v2684 = vsub.f32 %v2636, %v2658
      %v2685 = vsub.f32 %v2637, %v2660
      %v2686 = vsub.f32 %v2638, %v2662
      %v2687 = vsub.f32 %v2639, %v2664
      %v2688 = vsub.f32 %v2640, %v2666
      %v2689 = vsub.f32 %v2641, %v2668
      %v2690 = vsub.f32 %v2642, %v2670
      %v2691 = vsub.f32 %v2643, %v2672
      %v2692 = vsub.f32 %v2644, %v2674
      %v2693 = vsub.f32 %v2645, %v2676
      %v2694 = vsub.f32 %v2646, %v2678
      %v2695 = vmul.f32 %v2679, 1.442695
      %v2696 = vpow.pop %v2695
      %v2697 = vmul.f32 %v2680, 1.442695
      %v2698 = vpow.pop %v2697
      %v2699 = vmul.f32 %v2681, 1.442695
      %v2700 = vpow.pop %v2699
      %v2701 = vmul.f32 %v2682, 1.442695
      %v2702 = vpow.pop %v2701
      %v2703 = vmul.f32 %v2683, 1.442695
      %v2704 = vpow.pop %v2703
      %v2705 = vmul.f32 %v2684, 1.442695
      %v2706 = vpow.pop %v2705
      %v2707 = vmul.f32 %v2685, 1.442695
      %v2708 = vpow.pop %v2707
      %v2709 = vmul.f32 %v2686, 1.442695
      %v2710 = vpow.pop %v2709
      %v2711 = vmul.f32 %v2687, 1.442695
      %v2712 = vpow.pop %v2711
      %v2713 = vmul.f32 %v2688, 1.442695
      %v2714 = vpow.pop %v2713
      %v2715 = vmul.f32 %v2689, 1.442695
      %v2716 = vpow.pop %v2715
      %v2717 = vmul.f32 %v2690, 1.442695
      %v2718 = vpow.pop %v2717
      %v2719 = vmul.f32 %v2691, 1.442695
      %v2720 = vpow.pop %v2719
      %v2721 = vmul.f32 %v2692, 1.442695
      %v2722 = vpow.pop %v2721
      %v2723 = vmul.f32 %v2693, 1.442695
      %v2724 = vpow.pop %v2723
      %v2725 = vmul.f32 %v2694, 1.442695
      %v2726 = vpow.pop %v2725
      %2727 = vadd.xlane.f32.xlu0 %v2696
      %v2728 = vpop.xlane.xlu0 %2727
      %2729 = vadd.xlane.f32.xlu0 %v2698
      %v2730 = vpop.xlane.xlu0 %2729
      %2731 = vadd.xlane.f32.xlu0 %v2700
      %v2732 = vpop.xlane.xlu0 %2731
      %2733 = vadd.xlane.f32.xlu0 %v2702
      %v2734 = vpop.xlane.xlu0 %2733
      %2735 = vadd.xlane.f32.xlu0 %v2704
      %v2736 = vpop.xlane.xlu0 %2735
      %2737 = vadd.xlane.f32.xlu0 %v2706
      %v2738 = vpop.xlane.xlu0 %2737
      %2739 = vadd.xlane.f32.xlu0 %v2708
      %v2740 = vpop.xlane.xlu0 %2739
      %2741 = vadd.xlane.f32.xlu0 %v2710
      %v2742 = vpop.xlane.xlu0 %2741
      %2743 = vadd.xlane.f32.xlu0 %v2712
      %v2744 = vpop.xlane.xlu0 %2743
      %2745 = vadd.xlane.f32.xlu0 %v2714
      %v2746 = vpop.xlane.xlu0 %2745
      %2747 = vadd.xlane.f32.xlu0 %v2716
      %v2748 = vpop.xlane.xlu0 %2747
      %2749 = vadd.xlane.f32.xlu0 %v2718
      %v2750 = vpop.xlane.xlu0 %2749
      %2751 = vadd.xlane.f32.xlu0 %v2720
      %v2752 = vpop.xlane.xlu0 %2751
      %2753 = vadd.xlane.f32.xlu0 %v2722
      %v2754 = vpop.xlane.xlu0 %2753
      %2755 = vadd.xlane.f32.xlu0 %v2724
      %v2756 = vpop.xlane.xlu0 %2755
      %2757 = vadd.xlane.f32.xlu0 %v2726
      %v2758 = vpop.xlane.xlu0 %2757
      %v2759 = vrcp.pop %v2728
      %v2760 = vrcp.pop %v2730
      %v2761 = vrcp.pop %v2732
      %v2762 = vrcp.pop %v2734
      %v2763 = vrcp.pop %v2736
      %v2764 = vrcp.pop %v2738
      %v2765 = vrcp.pop %v2740
      %v2766 = vrcp.pop %v2742
      %v2767 = vrcp.pop %v2744
      %v2768 = vrcp.pop %v2746
      %v2769 = vrcp.pop %v2748
      %v2770 = vrcp.pop %v2750
      %v2771 = vrcp.pop %v2752
      %v2772 = vrcp.pop %v2754
      %v2773 = vrcp.pop %v2756
      %v2774 = vrcp.pop %v2758
      %v2775 = vmul.f32 %v2696, %v2759
      %v2776 = vmul.f32 %v2698, %v2760
      %v2777 = vmul.f32 %v2700, %v2761
      %v2778 = vmul.f32 %v2702, %v2762
      %v2779 = vmul.f32 %v2704, %v2763
      %v2780 = vmul.f32 %v2706, %v2764
      %v2781 = vmul.f32 %v2708, %v2765
      %v2782 = vmul.f32 %v2710, %v2766
      %v2783 = vmul.f32 %v2712, %v2767
      %v2784 = vmul.f32 %v2714, %v2768
      %v2785 = vmul.f32 %v2716, %v2769
      %v2786 = vmul.f32 %v2718, %v2770
      %v2787 = vmul.f32 %v2720, %v2771
      %v2788 = vmul.f32 %v2722, %v2772
      %v2789 = vmul.f32 %v2724, %v2773
      %v2790 = vmul.f32 %v2726, %v2774
      %v2791 = vpack.c.bf16 %v2776, %v2775
      %v2792 = vpack.c.bf16 %v2778, %v2777
      %v2793 = vpack.c.bf16 %v2780, %v2779
      %v2794 = vpack.c.bf16 %v2782, %v2781
      %v2795 = vpack.c.bf16 %v2784, %v2783
      %v2796 = vpack.c.bf16 %v2786, %v2785
      %v2797 = vpack.c.bf16 %v2788, %v2787
      %v2798 = vpack.c.bf16 %v2790, %v2789
      %2799 = vmatprep.subr.bf16.mxu0 0
      %2800 = vmatpush1.bf16.msra.mxu0 %v2212
      %2801 = vmatprep.subr.bf16.mxu0 0
      %2802 = vmatpush1.bf16.msra.mxu0 %v2211
      %2803 = vmatprep.subr.bf16.mxu0 0
      %2804 = vmatpush1.bf16.msra.mxu0 %v2210
      %2805 = vmatprep.subr.bf16.mxu0 0
      %2806 = vmatpush1.bf16.msra.mxu0 %v2209
      %2807 = vmatprep.subr.bf16.mxu0 0
      %2808 = vmatpush1.bf16.msra.mxu0 %v2208
      %2809 = vmatprep.subr.bf16.mxu0 0
      %2810 = vmatpush1.bf16.msra.mxu0 %v2207
      %2811 = vmatprep.subr.bf16.mxu0 0
      %2812 = vmatpush1.bf16.msra.mxu0 %v2206
      %2813 = vmatprep.subr.bf16.mxu0 0
      %2814 = vmatpush1.bf16.msra.mxu0 %v2205
      %2815 = vmatprep.subr.bf16.mxu0 0
      %2816 = vmatpush2.bf16.msra.mxu0 0
      %2817 = vmatprep.subr.bf16.mxu0 0
      %2818 = vmatpush2.bf16.msra.mxu0 0
      %2819 = vmatprep.subr.bf16.mxu0 0
      %2820 = vmatpush2.bf16.msra.mxu0 0
      %2821 = vmatprep.subr.bf16.mxu0 0
      %2822 = vmatpush2.bf16.msra.mxu0 0
      %2823 = vmatprep.subr.bf16.mxu0 0
      %2824 = vmatpush2.bf16.msra.mxu0 0
      %2825 = vmatprep.subr.bf16.mxu0 0
      %2826 = vmatpush2.bf16.msra.mxu0 0
      %2827 = vmatprep.subr.bf16.mxu0 0
      %2828 = vmatpush2.bf16.msra.mxu0 0
      %2829 = vmatprep.subr.bf16.mxu0 0
      %2830 = vmatpush2.bf16.msra.mxu0 0
      %2831 = vmatprep.mubr.bf16.mxu0 0
      %2832 = vmatmul.mubr.bf16.gmra.mxu0 %v2791
      %v2833 = vpop.f32.mrf.mxu0
      %v2834 = vadd.f32 0.0, %v2833
      %v2835 = vpop.f32.mrf.mxu0
      %v2836 = vpop.f32.mrf.mxu0
      %v2837 = vadd.f32 0.0, %v2836
      %v2838 = vpop.f32.mrf.mxu0
      %2839 = vmatprep.mubr.bf16.mxu0 0
      %2840 = vmatmul.mubr.bf16.gmra.mxu0 %v2792
      %v2841 = vpop.f32.mrf.mxu0
      %v2842 = vadd.f32 0.0, %v2841
      %v2843 = vpop.f32.mrf.mxu0
      %v2844 = vpop.f32.mrf.mxu0
      %v2845 = vadd.f32 0.0, %v2844
      %v2846 = vpop.f32.mrf.mxu0
      %2847 = vmatprep.mubr.bf16.mxu0 0
      %2848 = vmatmul.mubr.bf16.gmra.mxu0 %v2793
      %v2849 = vpop.f32.mrf.mxu0
      %v2850 = vadd.f32 0.0, %v2849
      %v2851 = vpop.f32.mrf.mxu0
      %v2852 = vpop.f32.mrf.mxu0
      %v2853 = vadd.f32 0.0, %v2852
      %v2854 = vpop.f32.mrf.mxu0
      %2855 = vmatprep.mubr.bf16.mxu0 0
      %2856 = vmatmul.mubr.bf16.gmra.mxu0 %v2794
      %v2857 = vpop.f32.mrf.mxu0
      %v2858 = vadd.f32 0.0, %v2857
      %v2859 = vpop.f32.mrf.mxu0
      %v2860 = vpop.f32.mrf.mxu0
      %v2861 = vadd.f32 0.0, %v2860
      %v2862 = vpop.f32.mrf.mxu0
      %2863 = vmatprep.mubr.bf16.mxu0 0
      %2864 = vmatmul.mubr.bf16.gmra.mxu0 %v2795
      %v2865 = vpop.f32.mrf.mxu0
      %v2866 = vadd.f32 0.0, %v2865
      %v2867 = vpop.f32.mrf.mxu0
      %v2868 = vpop.f32.mrf.mxu0
      %v2869 = vadd.f32 0.0, %v2868
      %v2870 = vpop.f32.mrf.mxu0
      %2871 = vmatprep.mubr.bf16.mxu0 0
      %2872 = vmatmul.mubr.bf16.gmra.mxu0 %v2796
      %v2873 = vpop.f32.mrf.mxu0
      %v2874 = vadd.f32 0.0, %v2873
      %v2875 = vpop.f32.mrf.mxu0
      %v2876 = vpop.f32.mrf.mxu0
      %v2877 = vadd.f32 0.0, %v2876
      %v2878 = vpop.f32.mrf.mxu0
      %2879 = vmatprep.mubr.bf16.mxu0 0
      %2880 = vmatmul.mubr.bf16.gmra.mxu0 %v2797
      %v2881 = vpop.f32.mrf.mxu0
      %v2882 = vadd.f32 0.0, %v2881
      %v2883 = vpop.f32.mrf.mxu0
      %v2884 = vpop.f32.mrf.mxu0
      %v2885 = vadd.f32 0.0, %v2884
      %v2886 = vpop.f32.mrf.mxu0
      %2887 = vmatprep.mubr.bf16.mxu0 0
      %2888 = vmatmul.mubr.bf16.gmra.mxu0 %v2798
      %v2889 = vpop.f32.mrf.mxu0
      %v2890 = vadd.f32 0.0, %v2889
      %v2891 = vpop.f32.mrf.mxu0
      %v2892 = vpop.f32.mrf.mxu0
      %v2893 = vadd.f32 0.0, %v2892
      %v2894 = vpop.f32.mrf.mxu0
      %2895 = vdwg.mxu0
      %s2896 = scalar_lea.vmem %s354, 128
      %2897 = vst.msk [vmem:[%s2896] sm:$0xff] %vm492, %v2834
      %2898 = vst.msk [vmem:[%s2896 + $0x8] sm:$0xff] %vm492, %v2837
      %2899 = vst.msk [vmem:[%s2896 + $0x10] sm:$0xff] %vm492, %v2842
      %2900 = vst.msk [vmem:[%s2896 + $0x18] sm:$0xff] %vm492, %v2845
      %2901 = vst.msk [vmem:[%s2896 + $0x20] sm:$0xff] %vm492, %v2850
      %2902 = vst.msk [vmem:[%s2896 + $0x28] sm:$0xff] %vm492, %v2853
      %2903 = vst.msk [vmem:[%s2896 + $0x30] sm:$0xff] %vm492, %v2858
      %2904 = vst.msk [vmem:[%s2896 + $0x38] sm:$0xff] %vm492, %v2861
      %2905 = vst.msk [vmem:[%s2896 + $0x40] sm:$0xff] %vm492, %v2866
      %2906 = vst.msk [vmem:[%s2896 + $0x48] sm:$0xff] %vm492, %v2869
      %2907 = vst.msk [vmem:[%s2896 + $0x50] sm:$0xff] %vm492, %v2874
      %2908 = vst.msk [vmem:[%s2896 + $0x58] sm:$0xff] %vm492, %v2877
      %2909 = vst.msk [vmem:[%s2896 + $0x60] sm:$0xff] %vm492, %v2882
      %2910 = vst.msk [vmem:[%s2896 + $0x68] sm:$0xff] %vm492, %v2885
      %2911 = vst.msk [vmem:[%s2896 + $0x70] sm:$0xff] %vm492, %v2890
      %2912 = vst.msk [vmem:[%s2896 + $0x78] sm:$0xff] %vm492, %v2893
      %s2913 = smul.u32 32, %s19
      %p2914 = scmp.lt.s32.totalorder %s2913, 63
      %s2915 = scalar_select %p2914, %s2913, 63
      %s2916 = smul.addr %s2915, 8
      %s2917 = scalar_lea.vmem %s8, %s2916
      // Predicated region
      $region53: #{tpu_custom_call.1} parent=51 // pred_check
        %p2918 = pneg %p220
      $region54: #{tpu_custom_call.1} parent=51 // pred_check_branch
        %2920 = sbr.rel (%p2918) target = $region56
      $region55: #{tpu_custom_call.1} parent=51 // pred_region
        %s2921 = smul.u32 32, %s19
      $region56: #{tpu_custom_call.1} parent=51 // pred_fallthru
        _
    $region52: #{tpu_custom_call.1} parent=5 // pred_fallthru
      _
    %p2922 = scmp.le.s32.totalorder 2, %s14
    // Predicated region
    $region57: #{tpu_custom_call.1} parent=5 // pred_check
      %p2923 = pneg %p2922
    $region58: #{tpu_custom_call.1} parent=5 // pred_check_branch
      %2925 = sbr.rel (%p2923) target = $region60
    $region59: #{tpu_custom_call.1} parent=5 // pred_region
      %s2926 = ssub.s32 %s14, 2
      // Predicated region
      $region61: #{tpu_custom_call.1} parent=59 // pred_check
        %p2927 = pneg %p226
      $region62: #{tpu_custom_call.1} parent=59 // pred_check_branch
        %2929 = sbr.rel (%p2927) target = $region64
      $region63: #{tpu_custom_call.1} parent=59 // pred_region
        %s2930 = smul.u32 32, %s20
        %p2931 = scmp.lt.s32.totalorder %s2930, 63
        %s2932 = scalar_select %p2931, %s2930, 63
        %s2933 = smul.addr %s2932, 8
        %s2934 = scalar_lea.vmem %s8, %s2933
      $region64: #{tpu_custom_call.1} parent=59 // pred_fallthru
        _
    $region60: #{tpu_custom_call.1} parent=5 // pred_fallthru
      _
  $region6: #{tpu_custom_call.1} parent=0 // loop_footer
    %s18 = sadd.s32 1, %s14
  $region7: #{tpu_custom_call.1} parent=0 // loop_footer_branch
    %13 = sbr.rel target = $region3
  $region8: #{tpu_custom_call.1} parent=0 // loop_exit
    _

</llo_original>
